<compile_context>
chip_gen: v7x
topology: tpu7x:2x2x1
jax: 0.10.0
libtpu: 0.0.40
codegen_flags: <defaults>
</compile_context>

<pallas_src>
import functools

import jax
import jax.numpy as jnp
from jax.experimental import pallas as pl
from jax.experimental.pallas import tpu as pltpu


# ---------------------------------------------------------------------------
# Model configuration
# ---------------------------------------------------------------------------
B, C, H, W = 2, 4, 16, 16
NUM_JOINTS = 21
NUM_VERTS = 64            # small synthetic stand-in for 778 MANO vertices
NUM_OBJ_PTS = 8           # object 2D control points
POSE_DIM, SHAPE_DIM = 48, 10
MANO_DIM = POSE_DIM + SHAPE_DIM          # 58

IMG_FEAT = C * H * W                     # 1024 = 8 * 128 (lane-aligned K)
BBOX_FEAT = 8                            # bbox_hand(4) + bbox_obj(4)
HIDDEN = 32                              # logical hidden width
HIDDEN_PAD = 128                         # padded hidden -> lane-dense feats

# concatenated-head column layout (lane-dense fused head output)
J2D_N = NUM_JOINTS * 2    # 42
J3D_N = NUM_JOINTS * 3    # 63
V3D_N = NUM_VERTS * 3     # 192
OBJ_N = NUM_OBJ_PTS * 2   # 16
HEAD_ORDER = ("joints2d", "joints3d", "verts3d", "mano_pose", "mano_shape", "obj_p2d")
HEAD_SIZES = {"joints2d": J2D_N, "joints3d": J3D_N, "verts3d": V3D_N,
              "mano_pose": POSE_DIM, "mano_shape": SHAPE_DIM, "obj_p2d": OBJ_N}
HEAD_OFFS = {}
_off = 0
for _name in HEAD_ORDER:
    HEAD_OFFS[_name] = (_off, _off + HEAD_SIZES[_name])
    _off += HEAD_SIZES[_name]
HEAD_TOTAL = _off          # 371
HEAD_PAD = 384             # 3 * 128 -> unmasked lane-dense stores on all gens

# loss weights (constructor args of HOModel)
MANO_LAMBDA_VERTS3D = 0.5
MANO_LAMBDA_JOINTS3D = 0.5
MANO_LAMBDA_MANOPOSE = 0.5
MANO_LAMBDA_MANOSHAPE = 0.5
LAMBDA_JOINTS2D = 1.0
LAMBDA_OBJECTS = 1.0


def _vmem_spec():
    return pl.BlockSpec(memory_space=pltpu.MemorySpace.VMEM)


def _cost(args, out_bytes, flops):
    bytes_accessed = out_bytes + sum(int(a.size) * a.dtype.itemsize for a in args)
    return pl.CostEstimate(flops=flops, transcendentals=0,
                           bytes_accessed=bytes_accessed)


# ---------------------------------------------------------------------------
# Kernel bodies
# ---------------------------------------------------------------------------
def _compute_heads(imgs_ref, bbox_ref, w_img_ref, w_bbox_ref, b_enc_ref,
                   w_heads_ref, b_heads_ref):
    """Encoder matmul + bias + ReLU + fused 6-head matmul, all in VMEM."""
    # bf16 operands -> MXU, f32 accumulation; everything elementwise stays f32.
    feats = jnp.dot(imgs_ref[...].astype(jnp.bfloat16), w_img_ref[...],
                    preferred_element_type=jnp.float32)
    feats = feats + jnp.dot(bbox_ref[...].astype(jnp.bfloat16), w_bbox_ref[...],
                            preferred_element_type=jnp.float32)
    feats = jnp.maximum(feats + b_enc_ref[...], 0.0)          # (B, 128) f32
    heads = jnp.dot(feats.astype(jnp.bfloat16), w_heads_ref[...],
                    preferred_element_type=jnp.float32) + b_heads_ref[...]
    return heads                                              # (B, 384) f32


def _train_kernel(imgs_ref, bbox_ref, juv_ref, mano_ref, objp_ref, mask_ref,
                  w_img_ref, w_bbox_ref, b_enc_ref, w_heads_ref, b_heads_ref,
                  t_j2d_ref, t_mano_ref, t_obj_ref,
                  sums_ref):
    """Forward + in-kernel target build + all loss reductions in one pass."""
    heads = _compute_heads(imgs_ref, bbox_ref, w_img_ref, w_bbox_ref,
                           b_enc_ref, w_heads_ref, b_heads_ref)

    # Target slab built with three small f32 placement matmuls (gt-MANO maps
    # and identity placements are folded into the t_* matrices on the host).
    targ = jnp.dot(juv_ref[...], t_j2d_ref[...], preferred_element_type=jnp.float32)
    targ = targ + jnp.dot(mano_ref[...], t_mano_ref[...],
                          preferred_element_type=jnp.float32)
    targ = targ + jnp.dot(objp_ref[...], t_obj_ref[...],
                          preferred_element_type=jnp.float32)

    d = heads - targ                                          # (B, 384) f32
    sq = d * d

    # per-row object mask must be applied BEFORE the row reduction
    obj_rowsum = jnp.sum(sq * mask_ref[...], axis=0, keepdims=True)   # (1, 384)
    rowsum = jnp.sum(sq, axis=0, keepdims=True)                       # (1, 384)

    col = jax.lax.broadcasted_iota(jnp.int32, rowsum.shape, 1)        # lane idx

    def seg_sum(vec, name):
        s, e = HEAD_OFFS[name]
        return jnp.sum(jnp.where((col >= s) & (col < e), vec, 0.0))

    sums_ref[0] = seg_sum(rowsum, "verts3d")
    sums_ref[1] = seg_sum(rowsum, "joints3d")
    sums_ref[2] = seg_sum(rowsum, "mano_pose")
    sums_ref[3] = seg_sum(rowsum, "mano_shape")
    sums_ref[4] = seg_sum(rowsum, "joints2d")
    sums_ref[5] = seg_sum(obj_rowsum, "obj_p2d")
    sums_ref[6] = jnp.sum(mask_ref[...])          # object mask count
    sums_ref[7] = jnp.float32(0.0)


def _infer_kernel(imgs_ref, bbox_ref, w_img_ref, w_bbox_ref, b_enc_ref,
                  w_heads_ref, b_heads_ref, o_ref):
    o_ref[...] = _compute_heads(imgs_ref, bbox_ref, w_img_ref, w_bbox_ref,
                                b_enc_ref, w_heads_ref, b_heads_ref)


# ---------------------------------------------------------------------------
# pallas_call wrappers
# ---------------------------------------------------------------------------
def fused_train(params, imgs_flat, bbox8, juv, mp, op, mask_col):
    bsz = imgs_flat.shape[0]
    args = (imgs_flat, bbox8, juv, mp, op, mask_col,
            params["w_img"], params["w_bbox"], params["b_enc"],
            params["w_heads"], params["b_heads"],
            params["t_j2d"], params["t_mano"], params["t_obj"])
    flops = 2 * bsz * (IMG_FEAT * HIDDEN_PAD + BBOX_FEAT * HIDDEN_PAD
                       + HIDDEN_PAD * HEAD_PAD
                       + (J2D_N + MANO_DIM + OBJ_N) * HEAD_PAD) \
        + 12 * bsz * HEAD_PAD
    return pl.pallas_call(
        _train_kernel,
        out_shape=jax.ShapeDtypeStruct((8,), jnp.float32),
        in_specs=[_vmem_spec()] * len(args),
        out_specs=pl.BlockSpec(memory_space=pltpu.MemorySpace.SMEM),
        cost_estimate=_cost(args, 8 * 4, flops),
    )(*args)


def fused_infer(params, imgs_flat, bbox8):
    bsz = imgs_flat.shape[0]
    args = (imgs_flat, bbox8,
            params["w_img"], params["w_bbox"], params["b_enc"],
            params["w_heads"], params["b_heads"])
    flops = 2 * bsz * (IMG_FEAT * HIDDEN_PAD + BBOX_FEAT * HIDDEN_PAD
                       + HIDDEN_PAD * HEAD_PAD)
    return pl.pallas_call(
        _infer_kernel,
        out_shape=jax.ShapeDtypeStruct((bsz, HEAD_PAD), jnp.float32),
        in_specs=[_vmem_spec()] * len(args),
        out_specs=_vmem_spec(),
        cost_estimate=_cost(args, bsz * HEAD_PAD * 4, flops),
    )(*args)


# ---------------------------------------------------------------------------
# Parameters (deterministic, pre-fused / pre-padded layout)
# ---------------------------------------------------------------------------
def init_params(key):
    ks = jax.random.split(key, 16)

    def lin(kw, kb, fin, fout, scale=0.02):
        return (scale * jax.random.normal(kw, (fin, fout), jnp.float32),
                scale * jax.random.normal(kb, (fout,), jnp.float32))

    feat_dim = IMG_FEAT + BBOX_FEAT
    w_enc, b_enc = lin(ks[0], ks[1], feat_dim, HIDDEN)
    head_params = {
        "joints2d": lin(ks[2], ks[3], HIDDEN, J2D_N),
        "joints3d": lin(ks[4], ks[5], HIDDEN, J3D_N),
        "verts3d": lin(ks[6], ks[7], HIDDEN, V3D_N),
        "mano_pose": lin(ks[8], ks[9], HIDDEN, POSE_DIM),
        "mano_shape": lin(ks[10], ks[11], HIDDEN, SHAPE_DIM),
        "obj_p2d": lin(ks[12], ks[13], HIDDEN, OBJ_N),
    }
    w_heads = jnp.concatenate([head_params[n][0] for n in HEAD_ORDER], axis=1)
    b_heads = jnp.concatenate([head_params[n][1] for n in HEAD_ORDER], axis=0)

    hid_pad = HIDDEN_PAD - HIDDEN
    # encoder weight split into the 1024-row image part and the 8-row bbox
    # part, hidden padded 32 -> 128 with zero columns (bias also zero-padded,
    # so ReLU(0)=0 and the padded feats contribute nothing to the heads).
    w_img = jnp.pad(w_enc[:IMG_FEAT], ((0, 0), (0, hid_pad))).astype(jnp.bfloat16)
    w_bbox = jnp.pad(w_enc[IMG_FEAT:], ((0, 0), (0, hid_pad))).astype(jnp.bfloat16)
    b_enc_pad = jnp.pad(b_enc, (0, hid_pad)).reshape(1, -1).astype(jnp.float32)
    w_heads_pad = jnp.pad(
        w_heads, ((0, hid_pad), (0, HEAD_PAD - HEAD_TOTAL))).astype(jnp.bfloat16)
    b_heads_pad = jnp.pad(
        b_heads, (0, HEAD_PAD - HEAD_TOTAL)).reshape(1, -1).astype(jnp.float32)

    # fixed "MANO layer" maps used to build gt_mano_results from mano_params
    gt_j3d_map = 0.02 * jax.random.normal(ks[14], (MANO_DIM, J3D_N), jnp.float32)
    gt_v3d_map = 0.02 * jax.random.normal(ks[15], (MANO_DIM, V3D_N), jnp.float32)

    # Target-placement matrices: targ_slab = juv@T_j2d + mano@T_mano + obj@T_obj
    s_j2d, e_j2d = HEAD_OFFS["joints2d"]
    s_j3d, e_j3d = HEAD_OFFS["joints3d"]
    s_v3d, e_v3d = HEAD_OFFS["verts3d"]
    s_pos, e_pos = HEAD_OFFS["mano_pose"]
    s_shp, e_shp = HEAD_OFFS["mano_shape"]
    s_obj, e_obj = HEAD_OFFS["obj_p2d"]

    t_j2d = jnp.zeros((J2D_N, HEAD_PAD), jnp.float32)
    t_j2d = t_j2d.at[:, s_j2d:e_j2d].set(jnp.eye(J2D_N, dtype=jnp.float32))

    t_mano = jnp.zeros((MANO_DIM, HEAD_PAD), jnp.float32)
    t_mano = t_mano.at[:, s_j3d:e_j3d].set(gt_j3d_map)
    t_mano = t_mano.at[:, s_v3d:e_v3d].set(gt_v3d_map)
    t_mano = t_mano.at[:POSE_DIM, s_pos:e_pos].set(jnp.eye(POSE_DIM, dtype=jnp.float32))
    t_mano = t_mano.at[POSE_DIM:, s_shp:e_shp].set(jnp.eye(SHAPE_DIM, dtype=jnp.float32))

    t_obj = jnp.zeros((OBJ_N, HEAD_PAD), jnp.float32)
    t_obj = t_obj.at[:, s_obj:e_obj].set(jnp.eye(OBJ_N, dtype=jnp.float32))

    return {
        "w_img": w_img, "w_bbox": w_bbox, "b_enc": b_enc_pad,
        "w_heads": w_heads_pad, "b_heads": b_heads_pad,
        "t_j2d": t_j2d, "t_mano": t_mano, "t_obj": t_obj,
    }


# ---------------------------------------------------------------------------
# Prediction slicing (inference path)
# ---------------------------------------------------------------------------
def _head(pred_slab, name, bsz):
    s, e = HEAD_OFFS[name]
    return pred_slab[:bsz, s:e]


def slice_preds(pred_slab, bsz):
    preds_joints2d = [_head(pred_slab, "joints2d", bsz).reshape(bsz, NUM_JOINTS, 2)]
    pred_mano_results = {
        "joints3d": _head(pred_slab, "joints3d", bsz).reshape(bsz, NUM_JOINTS, 3),
        "verts3d": _head(pred_slab, "verts3d", bsz).reshape(bsz, NUM_VERTS, 3),
        "mano_pose": _head(pred_slab, "mano_pose", bsz),
        "mano_shape": _head(pred_slab, "mano_shape", bsz),
    }
    preds_obj = {"p2d": _head(pred_slab, "obj_p2d", bsz).reshape(bsz, NUM_OBJ_PTS, 2)}
    return preds_joints2d, pred_mano_results, preds_obj


# ---------------------------------------------------------------------------
# HOModel forward
# ---------------------------------------------------------------------------
@functools.partial(jax.jit, static_argnames=("training",))
def ho_model_forward(params, imgs, bbox_hand, bbox_obj, joints_uv=None,
                     mano_params=None, obj_p2d_gt=None, obj_mask=None,
                     obj_lossmask=None, training=True):
    bsz = imgs.shape[0]
    imgs_flat = imgs.reshape(bsz, -1).astype(jnp.float32)              # (B, 1024)
    bbox8 = jnp.concatenate(
        [bbox_hand.reshape(bsz, -1), bbox_obj.reshape(bsz, -1)],
        axis=-1).astype(jnp.float32)                                   # (B, 8)

    if training:
        juv = (joints_uv.reshape(bsz, -1).astype(jnp.float32)
               if joints_uv is not None else jnp.zeros((bsz, J2D_N), jnp.float32))
        mp = (mano_params.astype(jnp.float32)
              if mano_params is not None else jnp.zeros((bsz, MANO_DIM), jnp.float32))
        op = (obj_p2d_gt.reshape(bsz, -1).astype(jnp.float32)
              if obj_p2d_gt is not None else jnp.zeros((bsz, OBJ_N), jnp.float32))
        if obj_mask is not None:
            m = obj_mask.astype(jnp.float32).reshape(bsz, 1)
            if obj_lossmask is not None:
                m = m * obj_lossmask.astype(jnp.float32).reshape(bsz, 1)
        else:
            m = jnp.zeros((bsz, 1), jnp.float32)

        sums = fused_train(params, imgs_flat, bbox8, juv, mp, op, m)   # (8,) f32

        losses = {}
        total_loss = jnp.float32(0.0)

        if mano_params is not None:
            mesh3d = sums[0] / jnp.float32(bsz * V3D_N)
            joints3d = sums[1] / jnp.float32(bsz * J3D_N)
            pose = sums[2] / jnp.float32(bsz * POSE_DIM)
            shape = sums[3] / jnp.float32(bsz * SHAPE_DIM)
            mano_total = (MANO_LAMBDA_VERTS3D * mesh3d
                          + MANO_LAMBDA_JOINTS3D * joints3d
                          + MANO_LAMBDA_MANOPOSE * pose
                          + MANO_LAMBDA_MANOSHAPE * shape)
            losses["mano_mesh3d_loss"] = mesh3d
            losses["mano_joints3d_loss"] = joints3d
            losses["manopose_loss"] = pose
            losses["manoshape_loss"] = shape
            losses["mano_total_loss"] = mano_total
            total_loss = total_loss + mano_total

        if joints_uv is not None:
            j2d = sums[4] / jnp.float32(bsz * J2D_N)
            j2d_total = LAMBDA_JOINTS2D * j2d
            losses["hm_joints2d_loss"] = j2d
            losses["joints2d_total_loss"] = j2d_total
            total_loss = total_loss + j2d_total

        if obj_p2d_gt is not None:
            # TODO(synk): per-element mean over masked samples; if the
            # reference ObjectLoss uses per-sample mean then batch mean, this
            # diverges for heterogeneous masks.
            count = jnp.maximum(sums[6] * jnp.float32(OBJ_N), 1.0)
            obj_reg = sums[5] / count
            obj_total = LAMBDA_OBJECTS * obj_reg
            losses["obj_reg_loss"] = obj_reg
            losses["obj_total_loss"] = obj_total
            total_loss = total_loss + obj_total

        losses["total_loss"] = total_loss
        return total_loss, losses
    else:
        pred_slab = fused_infer(params, imgs_flat, bbox8)              # (B, 384)
        return slice_preds(pred_slab, bsz)


# ---------------------------------------------------------------------------
if __name__ == "__main__":
    key = jax.random.PRNGKey(0)
    kp, k1, k2, k3, k4, k5, k6, k7 = jax.random.split(key, 8)

    params = init_params(kp)

    imgs = jax.random.normal(k1, (B, C, H, W), jnp.float32)           # NCHW
    bbox_hand = jax.random.uniform(k2, (B, 4), jnp.float32) * 16.0
    bbox_obj = jax.random.uniform(k3, (B, 4), jnp.float32) * 16.0
    joints_uv = jax.random.normal(k4, (B, NUM_JOINTS, 2), jnp.float32)
    mano_params = jax.random.normal(k5, (B, MANO_DIM), jnp.float32)
    obj_p2d_gt = jax.random.normal(k6, (B, NUM_OBJ_PTS, 2), jnp.float32)
    obj_mask = jnp.ones((B,), jnp.float32)

    total_loss, losses = ho_model_forward(
        params, imgs, bbox_hand, bbox_obj,
        joints_uv=joints_uv, mano_params=mano_params,
        obj_p2d_gt=obj_p2d_gt, obj_mask=obj_mask, training=True)
    jax.block_until_ready(total_loss)
    jax.block_until_ready(losses)

    # also exercise the inference path once
    preds_joints2d, pred_mano_results, preds_obj = ho_model_forward(
        params, imgs, bbox_hand, bbox_obj, training=False)
    jax.block_until_ready(preds_obj["p2d"])

    print("KERNEL_OK")
</pallas_src>

<mosaic_0001>
module attributes {stable_mosaic.version = 11 : i64} {
  func.func @_train_kernel(%arg0: memref<2x1024xf32, #tpu.memory_space<vmem>>, %arg1: memref<2x8xf32, #tpu.memory_space<vmem>>, %arg2: memref<2x42xf32, #tpu.memory_space<vmem>>, %arg3: memref<2x58xf32, #tpu.memory_space<vmem>>, %arg4: memref<2x16xf32, #tpu.memory_space<vmem>>, %arg5: memref<2x1xf32, #tpu.memory_space<vmem>>, %arg6: memref<1024x128xbf16, #tpu.memory_space<vmem>>, %arg7: memref<8x128xbf16, #tpu.memory_space<vmem>>, %arg8: memref<1x128xf32, #tpu.memory_space<vmem>>, %arg9: memref<128x384xbf16, #tpu.memory_space<vmem>>, %arg10: memref<1x384xf32, #tpu.memory_space<vmem>>, %arg11: memref<42x384xf32, #tpu.memory_space<vmem>>, %arg12: memref<58x384xf32, #tpu.memory_space<vmem>>, %arg13: memref<16x384xf32, #tpu.memory_space<vmem>>, %arg14: memref<8xf32, #tpu.memory_space<smem>>) attributes {dimension_semantics = [], scalar_prefetch = 0 : i64, scratch_operands = 0 : i64, tpu.core_type = #tpu.core_type<tc>} {
    %c0 = arith.constant 0 : index
    %c0_0 = arith.constant 0 : index
    %0 = vector.load %arg0[%c0, %c0_0] : memref<2x1024xf32, #tpu.memory_space<vmem>>, vector<2x1024xf32>
    %1 = arith.truncf %0 : vector<2x1024xf32> to vector<2x1024xbf16>
    %c0_1 = arith.constant 0 : index
    %c0_2 = arith.constant 0 : index
    %2 = vector.load %arg6[%c0_1, %c0_2] : memref<1024x128xbf16, #tpu.memory_space<vmem>>, vector<1024x128xbf16>
    %cst = arith.constant dense<0.000000e+00> : vector<2x128xf32>
    %3 = tpu.matmul %1, %2, %cst {dimension_numbers = #tpu.dot_dimension_numbers<[1], [0], [0], [1], [0, 0, 1, 1], [], []>} : vector<2x1024xbf16>, vector<1024x128xbf16>, vector<2x128xf32> -> vector<2x128xf32>
    %c0_3 = arith.constant 0 : index
    %c0_4 = arith.constant 0 : index
    %4 = vector.load %arg1[%c0_3, %c0_4] : memref<2x8xf32, #tpu.memory_space<vmem>>, vector<2x8xf32>
    %5 = arith.truncf %4 : vector<2x8xf32> to vector<2x8xbf16>
    %c0_5 = arith.constant 0 : index
    %c0_6 = arith.constant 0 : index
    %6 = vector.load %arg7[%c0_5, %c0_6] : memref<8x128xbf16, #tpu.memory_space<vmem>>, vector<8x128xbf16>
    %cst_7 = arith.constant dense<0.000000e+00> : vector<2x128xf32>
    %7 = tpu.matmul %5, %6, %cst_7 {dimension_numbers = #tpu.dot_dimension_numbers<[1], [0], [0], [1], [0, 0, 1, 1], [], []>} : vector<2x8xbf16>, vector<8x128xbf16>, vector<2x128xf32> -> vector<2x128xf32>
    %8 = arith.addf %3, %7 : vector<2x128xf32>
    %c0_8 = arith.constant 0 : index
    %c0_9 = arith.constant 0 : index
    %9 = vector.load %arg8[%c0_8, %c0_9] : memref<1x128xf32, #tpu.memory_space<vmem>>, vector<1x128xf32>
    %10 = vector.broadcast %9 : vector<1x128xf32> to vector<2x128xf32>
    %11 = arith.addf %8, %10 : vector<2x128xf32>
    %cst_10 = arith.constant 0.000000e+00 : f32
    %12 = vector.broadcast %cst_10 : f32 to vector<2x128xf32>
    %13 = arith.maximumf %11, %12 : vector<2x128xf32>
    %14 = arith.truncf %13 : vector<2x128xf32> to vector<2x128xbf16>
    %c0_11 = arith.constant 0 : index
    %c0_12 = arith.constant 0 : index
    %15 = vector.load %arg9[%c0_11, %c0_12] : memref<128x384xbf16, #tpu.memory_space<vmem>>, vector<128x384xbf16>
    %cst_13 = arith.constant dense<0.000000e+00> : vector<2x384xf32>
    %16 = tpu.matmul %14, %15, %cst_13 {dimension_numbers = #tpu.dot_dimension_numbers<[1], [0], [0], [1], [0, 0, 1, 1], [], []>} : vector<2x128xbf16>, vector<128x384xbf16>, vector<2x384xf32> -> vector<2x384xf32>
    %c0_14 = arith.constant 0 : index
    %c0_15 = arith.constant 0 : index
    %17 = vector.load %arg10[%c0_14, %c0_15] : memref<1x384xf32, #tpu.memory_space<vmem>>, vector<1x384xf32>
    %18 = vector.broadcast %17 : vector<1x384xf32> to vector<2x384xf32>
    %19 = arith.addf %16, %18 : vector<2x384xf32>
    %c0_16 = arith.constant 0 : index
    %c0_17 = arith.constant 0 : index
    %20 = vector.load %arg2[%c0_16, %c0_17] : memref<2x42xf32, #tpu.memory_space<vmem>>, vector<2x42xf32>
    %c0_18 = arith.constant 0 : index
    %c0_19 = arith.constant 0 : index
    %21 = vector.load %arg11[%c0_18, %c0_19] : memref<42x384xf32, #tpu.memory_space<vmem>>, vector<42x384xf32>
    %cst_20 = arith.constant dense<0.000000e+00> : vector<2x384xf32>
    %22 = tpu.matmul %20, %21, %cst_20 {dimension_numbers = #tpu.dot_dimension_numbers<[1], [0], [0], [1], [0, 0, 1, 1], [], []>} : vector<2x42xf32>, vector<42x384xf32>, vector<2x384xf32> -> vector<2x384xf32>
    %c0_21 = arith.constant 0 : index
    %c0_22 = arith.constant 0 : index
    %23 = vector.load %arg3[%c0_21, %c0_22] : memref<2x58xf32, #tpu.memory_space<vmem>>, vector<2x58xf32>
    %c0_23 = arith.constant 0 : index
    %c0_24 = arith.constant 0 : index
    %24 = vector.load %arg12[%c0_23, %c0_24] : memref<58x384xf32, #tpu.memory_space<vmem>>, vector<58x384xf32>
    %cst_25 = arith.constant dense<0.000000e+00> : vector<2x384xf32>
    %25 = tpu.matmul %23, %24, %cst_25 {dimension_numbers = #tpu.dot_dimension_numbers<[1], [0], [0], [1], [0, 0, 1, 1], [], []>} : vector<2x58xf32>, vector<58x384xf32>, vector<2x384xf32> -> vector<2x384xf32>
    %26 = arith.addf %22, %25 : vector<2x384xf32>
    %c0_26 = arith.constant 0 : index
    %c0_27 = arith.constant 0 : index
    %27 = vector.load %arg4[%c0_26, %c0_27] : memref<2x16xf32, #tpu.memory_space<vmem>>, vector<2x16xf32>
    %c0_28 = arith.constant 0 : index
    %c0_29 = arith.constant 0 : index
    %28 = vector.load %arg13[%c0_28, %c0_29] : memref<16x384xf32, #tpu.memory_space<vmem>>, vector<16x384xf32>
    %cst_30 = arith.constant dense<0.000000e+00> : vector<2x384xf32>
    %29 = tpu.matmul %27, %28, %cst_30 {dimension_numbers = #tpu.dot_dimension_numbers<[1], [0], [0], [1], [0, 0, 1, 1], [], []>} : vector<2x16xf32>, vector<16x384xf32>, vector<2x384xf32> -> vector<2x384xf32>
    %30 = arith.addf %26, %29 : vector<2x384xf32>
    %31 = arith.subf %19, %30 : vector<2x384xf32>
    %32 = arith.mulf %31, %31 : vector<2x384xf32>
    %c0_31 = arith.constant 0 : index
    %c0_32 = arith.constant 0 : index
    %33 = vector.load %arg5[%c0_31, %c0_32] : memref<2x1xf32, #tpu.memory_space<vmem>>, vector<2x1xf32>
    %34 = vector.broadcast %33 : vector<2x1xf32> to vector<2x384xf32>
    %35 = arith.mulf %32, %34 : vector<2x384xf32>
    %cst_33 = arith.constant dense<0.000000e+00> : vector<384xf32>
    %36 = vector.multi_reduction <add>, %35, %cst_33 [0] : vector<2x384xf32> to vector<384xf32>
    %37 = vector.shape_cast %36 : vector<384xf32> to vector<1x384xf32>
    %cst_34 = arith.constant dense<0.000000e+00> : vector<384xf32>
    %38 = vector.multi_reduction <add>, %32, %cst_34 [0] : vector<2x384xf32> to vector<384xf32>
    %39 = vector.shape_cast %38 : vector<384xf32> to vector<1x384xf32>
    %40 = tpu.iota {dimensions = array<i32: 1>} : vector<1x384xi32>
    %c105_i32 = arith.constant 105 : i32
    %41 = vector.broadcast %c105_i32 : i32 to vector<1x384xi32>
    %42 = arith.cmpi sge, %40, %41 : vector<1x384xi32>
    %c297_i32 = arith.constant 297 : i32
    %43 = vector.broadcast %c297_i32 : i32 to vector<1x384xi32>
    %44 = arith.cmpi slt, %40, %43 : vector<1x384xi32>
    %45 = arith.andi %42, %44 : vector<1x384xi1>
    %cst_35 = arith.constant 0.000000e+00 : f32
    %46 = vector.broadcast %cst_35 : f32 to vector<1x384xf32>
    %47 = arith.select %45, %39, %46 : vector<1x384xi1>, vector<1x384xf32>
    %48 = vector.shape_cast %47 : vector<1x384xf32> to vector<1x1x384xf32>
    %cst_36 = arith.constant dense<0.000000e+00> : vector<1xf32>
    %49 = vector.multi_reduction <add>, %48, %cst_36 [1, 2] : vector<1x1x384xf32> to vector<1xf32>
    %50 = vector.shape_cast %49 : vector<1xf32> to vector<1x1x1xf32>
    %51 = vector.extract %50[0, 0, 0] : f32 from vector<1x1x1xf32>
    %c0_37 = arith.constant 0 : index
    %52 = memref.load %arg14[%c0_37] : memref<8xf32, #tpu.memory_space<smem>>
    memref.store %51, %arg14[%c0_37] : memref<8xf32, #tpu.memory_space<smem>>
    %c42_i32 = arith.constant 42 : i32
    %53 = vector.broadcast %c42_i32 : i32 to vector<1x384xi32>
    %54 = arith.cmpi sge, %40, %53 : vector<1x384xi32>
    %c105_i32_38 = arith.constant 105 : i32
    %55 = vector.broadcast %c105_i32_38 : i32 to vector<1x384xi32>
    %56 = arith.cmpi slt, %40, %55 : vector<1x384xi32>
    %57 = arith.andi %54, %56 : vector<1x384xi1>
    %cst_39 = arith.constant 0.000000e+00 : f32
    %58 = vector.broadcast %cst_39 : f32 to vector<1x384xf32>
    %59 = arith.select %57, %39, %58 : vector<1x384xi1>, vector<1x384xf32>
    %60 = vector.shape_cast %59 : vector<1x384xf32> to vector<1x1x384xf32>
    %cst_40 = arith.constant dense<0.000000e+00> : vector<1xf32>
    %61 = vector.multi_reduction <add>, %60, %cst_40 [1, 2] : vector<1x1x384xf32> to vector<1xf32>
    %62 = vector.shape_cast %61 : vector<1xf32> to vector<1x1x1xf32>
    %63 = vector.extract %62[0, 0, 0] : f32 from vector<1x1x1xf32>
    %c1 = arith.constant 1 : index
    %64 = memref.load %arg14[%c1] : memref<8xf32, #tpu.memory_space<smem>>
    memref.store %63, %arg14[%c1] : memref<8xf32, #tpu.memory_space<smem>>
    %c297_i32_41 = arith.constant 297 : i32
    %65 = vector.broadcast %c297_i32_41 : i32 to vector<1x384xi32>
    %66 = arith.cmpi sge, %40, %65 : vector<1x384xi32>
    %c345_i32 = arith.constant 345 : i32
    %67 = vector.broadcast %c345_i32 : i32 to vector<1x384xi32>
    %68 = arith.cmpi slt, %40, %67 : vector<1x384xi32>
    %69 = arith.andi %66, %68 : vector<1x384xi1>
    %cst_42 = arith.constant 0.000000e+00 : f32
    %70 = vector.broadcast %cst_42 : f32 to vector<1x384xf32>
    %71 = arith.select %69, %39, %70 : vector<1x384xi1>, vector<1x384xf32>
    %72 = vector.shape_cast %71 : vector<1x384xf32> to vector<1x1x384xf32>
    %cst_43 = arith.constant dense<0.000000e+00> : vector<1xf32>
    %73 = vector.multi_reduction <add>, %72, %cst_43 [1, 2] : vector<1x1x384xf32> to vector<1xf32>
    %74 = vector.shape_cast %73 : vector<1xf32> to vector<1x1x1xf32>
    %75 = vector.extract %74[0, 0, 0] : f32 from vector<1x1x1xf32>
    %c2 = arith.constant 2 : index
    %76 = memref.load %arg14[%c2] : memref<8xf32, #tpu.memory_space<smem>>
    memref.store %75, %arg14[%c2] : memref<8xf32, #tpu.memory_space<smem>>
    %c345_i32_44 = arith.constant 345 : i32
    %77 = vector.broadcast %c345_i32_44 : i32 to vector<1x384xi32>
    %78 = arith.cmpi sge, %40, %77 : vector<1x384xi32>
    %c355_i32 = arith.constant 355 : i32
    %79 = vector.broadcast %c355_i32 : i32 to vector<1x384xi32>
    %80 = arith.cmpi slt, %40, %79 : vector<1x384xi32>
    %81 = arith.andi %78, %80 : vector<1x384xi1>
    %cst_45 = arith.constant 0.000000e+00 : f32
    %82 = vector.broadcast %cst_45 : f32 to vector<1x384xf32>
    %83 = arith.select %81, %39, %82 : vector<1x384xi1>, vector<1x384xf32>
    %84 = vector.shape_cast %83 : vector<1x384xf32> to vector<1x1x384xf32>
    %cst_46 = arith.constant dense<0.000000e+00> : vector<1xf32>
    %85 = vector.multi_reduction <add>, %84, %cst_46 [1, 2] : vector<1x1x384xf32> to vector<1xf32>
    %86 = vector.shape_cast %85 : vector<1xf32> to vector<1x1x1xf32>
    %87 = vector.extract %86[0, 0, 0] : f32 from vector<1x1x1xf32>
    %c3 = arith.constant 3 : index
    %88 = memref.load %arg14[%c3] : memref<8xf32, #tpu.memory_space<smem>>
    memref.store %87, %arg14[%c3] : memref<8xf32, #tpu.memory_space<smem>>
    %c0_i32 = arith.constant 0 : i32
    %89 = vector.broadcast %c0_i32 : i32 to vector<1x384xi32>
    %90 = arith.cmpi sge, %40, %89 : vector<1x384xi32>
    %c42_i32_47 = arith.constant 42 : i32
    %91 = vector.broadcast %c42_i32_47 : i32 to vector<1x384xi32>
    %92 = arith.cmpi slt, %40, %91 : vector<1x384xi32>
    %93 = arith.andi %90, %92 : vector<1x384xi1>
    %cst_48 = arith.constant 0.000000e+00 : f32
    %94 = vector.broadcast %cst_48 : f32 to vector<1x384xf32>
    %95 = arith.select %93, %39, %94 : vector<1x384xi1>, vector<1x384xf32>
    %96 = vector.shape_cast %95 : vector<1x384xf32> to vector<1x1x384xf32>
    %cst_49 = arith.constant dense<0.000000e+00> : vector<1xf32>
    %97 = vector.multi_reduction <add>, %96, %cst_49 [1, 2] : vector<1x1x384xf32> to vector<1xf32>
    %98 = vector.shape_cast %97 : vector<1xf32> to vector<1x1x1xf32>
    %99 = vector.extract %98[0, 0, 0] : f32 from vector<1x1x1xf32>
    %c4 = arith.constant 4 : index
    %100 = memref.load %arg14[%c4] : memref<8xf32, #tpu.memory_space<smem>>
    memref.store %99, %arg14[%c4] : memref<8xf32, #tpu.memory_space<smem>>
    %c355_i32_50 = arith.constant 355 : i32
    %101 = vector.broadcast %c355_i32_50 : i32 to vector<1x384xi32>
    %102 = arith.cmpi sge, %40, %101 : vector<1x384xi32>
    %c371_i32 = arith.constant 371 : i32
    %103 = vector.broadcast %c371_i32 : i32 to vector<1x384xi32>
    %104 = arith.cmpi slt, %40, %103 : vector<1x384xi32>
    %105 = arith.andi %102, %104 : vector<1x384xi1>
    %cst_51 = arith.constant 0.000000e+00 : f32
    %106 = vector.broadcast %cst_51 : f32 to vector<1x384xf32>
    %107 = arith.select %105, %37, %106 : vector<1x384xi1>, vector<1x384xf32>
    %108 = vector.shape_cast %107 : vector<1x384xf32> to vector<1x1x384xf32>
    %cst_52 = arith.constant dense<0.000000e+00> : vector<1xf32>
    %109 = vector.multi_reduction <add>, %108, %cst_52 [1, 2] : vector<1x1x384xf32> to vector<1xf32>
    %110 = vector.shape_cast %109 : vector<1xf32> to vector<1x1x1xf32>
    %111 = vector.extract %110[0, 0, 0] : f32 from vector<1x1x1xf32>
    %c5 = arith.constant 5 : index
    %112 = memref.load %arg14[%c5] : memref<8xf32, #tpu.memory_space<smem>>
    memref.store %111, %arg14[%c5] : memref<8xf32, #tpu.memory_space<smem>>
    %c0_53 = arith.constant 0 : index
    %c0_54 = arith.constant 0 : index
    %113 = vector.load %arg5[%c0_53, %c0_54] : memref<2x1xf32, #tpu.memory_space<vmem>>, vector<2x1xf32>
    %114 = vector.shape_cast %113 : vector<2x1xf32> to vector<1x2x1xf32>
    %cst_55 = arith.constant dense<0.000000e+00> : vector<1xf32>
    %115 = vector.multi_reduction <add>, %114, %cst_55 [1, 2] : vector<1x2x1xf32> to vector<1xf32>
    %116 = vector.shape_cast %115 : vector<1xf32> to vector<1x1x1xf32>
    %117 = vector.extract %116[0, 0, 0] : f32 from vector<1x1x1xf32>
    %c6 = arith.constant 6 : index
    %118 = memref.load %arg14[%c6] : memref<8xf32, #tpu.memory_space<smem>>
    memref.store %117, %arg14[%c6] : memref<8xf32, #tpu.memory_space<smem>>
    %cst_56 = arith.constant 0.000000e+00 : f32
    %c7 = arith.constant 7 : index
    %119 = memref.load %arg14[%c7] : memref<8xf32, #tpu.memory_space<smem>>
    memref.store %cst_56, %arg14[%c7] : memref<8xf32, #tpu.memory_space<smem>>
    return
  }
}

</mosaic_0001>

<llo_original>
// kernel: ho_model_forward.1
$region0: #{ho_model_forward.1}
  #allocation0 [shape = 'u32[]', space=smem, size = 0x4, offset = 0x4, fixed_abs, tag = 'smem constant byte address 0x4 - core index']
  #allocation1 [shape = 'u32[144,128]{1,0:T(1,128)}', space=vmem, size = 0x12000, scoped, tag = 'internal scratch']
  %s0 = inlined_call_operand.vmem [shape: f32[2,1024], index: 0, kind: input, shape index: {}]
  %s1 = inlined_call_operand.vmem [shape: f32[2,8], index: 1, kind: input, shape index: {}]
  %s2 = inlined_call_operand.vmem [shape: f32[2,42], index: 2, kind: input, shape index: {}]
  %s3 = inlined_call_operand.vmem [shape: f32[2,58], index: 3, kind: input, shape index: {}]
  %s4 = inlined_call_operand.vmem [shape: f32[2,16], index: 4, kind: input, shape index: {}]
  %s5 = inlined_call_operand.vmem [shape: f32[2,1], index: 5, kind: input, shape index: {}]
  %s6 = inlined_call_operand.hbm [shape: bf16[1024,128], index: 6, kind: input, shape index: {}]
  %s7 = inlined_call_operand.vmem [shape: bf16[8,128], index: 7, kind: input, shape index: {}]
  %s8 = inlined_call_operand.vmem [shape: f32[1,128], index: 8, kind: input, shape index: {}]
  %s9 = inlined_call_operand.vmem [shape: bf16[128,384], index: 9, kind: input, shape index: {}]
  %s10 = inlined_call_operand.vmem [shape: f32[1,384], index: 10, kind: input, shape index: {}]
  %s11 = inlined_call_operand.hbm [shape: f32[42,384], index: 11, kind: input, shape index: {}]
  %s12 = inlined_call_operand.hbm [shape: f32[58,384], index: 12, kind: input, shape index: {}]
  %s13 = inlined_call_operand.hbm [shape: f32[16,384], index: 13, kind: input, shape index: {}]
  %s14 = inlined_call_operand.vmem [shape: f32[8], index: 14, kind: output, shape index: {}]
  %s15 = sld [smem:[#allocation0]]
  $region82: #{ho_model_forward.1} parent=0
    _
  %s17 = ssub.s32 1, %s15
  %s18 = scalar_select 0, %s17, %s15
  $region1: #{ho_model_forward.1} parent=0
    #allocation2 [shape = 'u8[262144]{0}', space=vmem, size = 0x40000, scoped, tag = 'input window, operand 6, single buffered']
    #allocation3 [shape = 's32[1]{0}', space=sflag, size = 0x4, scoped, tag = 'scoped memory for ho_model_forward.1']
    #allocation4 [shape = 's32[1]{0}', space=sflag, size = 0x4, scoped, tag = 'scoped memory for ho_model_forward.1']
    #allocation5 [shape = 'u8[73728]{0}', space=vmem, size = 0x12000, scoped, tag = 'input window, operand 11, single buffered']
    #allocation6 [shape = 's32[1]{0}', space=sflag, size = 0x4, scoped, tag = 'scoped memory for ho_model_forward.1']
    #allocation7 [shape = 'u8[98304]{0}', space=vmem, size = 0x18000, scoped, tag = 'input window, operand 12, single buffered']
    #allocation8 [shape = 'u8[24576]{0}', space=vmem, size = 0x6000, scoped, tag = 'input window, operand 13, single buffered']
    #allocation9 [shape = 's32[1]{0}', space=sflag, size = 0x4, scoped, tag = 'scoped memory for ho_model_forward.1']
    #allocation10 [shape = 'u8[512]{0}', space=smem, size = 0x200, scoped, tag = 'output window, operand 0, single buffered']
    %19 = vsyncpa [#allocation3], 0
    %20 = vsyncpa [#allocation6], 0
    %21 = vsyncpa [#allocation9], 0
    %22 = vsyncpa [#allocation4], 0
    // Predicated region
    $region2: #{ho_model_forward.1} parent=1 // pred_check
      _
    $region3: #{ho_model_forward.1} parent=1 // pred_check_branch
      %24 = sbr.rel (0) target = $region5
    $region4: #{ho_model_forward.1} parent=1 // pred_region
      _
    $region5: #{ho_model_forward.1} parent=1 // pred_fallthru
      _
    // Predicated region
    $region6: #{ho_model_forward.1} parent=1 // pred_check
      _
    $region7: #{ho_model_forward.1} parent=1 // pred_check_branch
      %26 = sbr.rel (0) target = $region9
    $region8: #{ho_model_forward.1} parent=1 // pred_region
      _
    $region9: #{ho_model_forward.1} parent=1 // pred_fallthru
      _
    // Predicated region
    $region10: #{ho_model_forward.1} parent=1 // pred_check
      _
    $region11: #{ho_model_forward.1} parent=1 // pred_check_branch
      %28 = sbr.rel (0) target = $region13
    $region12: #{ho_model_forward.1} parent=1 // pred_region
      _
    $region13: #{ho_model_forward.1} parent=1 // pred_fallthru
      _
    // Predicated region
    $region14: #{ho_model_forward.1} parent=1 // pred_check
      _
    $region15: #{ho_model_forward.1} parent=1 // pred_check_branch
      %30 = sbr.rel (0) target = $region17
    $region16: #{ho_model_forward.1} parent=1 // pred_region
      _
    $region17: #{ho_model_forward.1} parent=1 // pred_fallthru
      _
    // Predicated region
    $region18: #{ho_model_forward.1} parent=1 // pred_check
      _
    $region19: #{ho_model_forward.1} parent=1 // pred_check_branch
      %32 = sbr.rel (0) target = $region21
    $region20: #{ho_model_forward.1} parent=1 // pred_region
      _
    $region21: #{ho_model_forward.1} parent=1 // pred_fallthru
      _
    // Predicated region
    $region22: #{ho_model_forward.1} parent=1 // pred_check
      _
    $region23: #{ho_model_forward.1} parent=1 // pred_check_branch
      %34 = sbr.rel (0) target = $region25
    $region24: #{ho_model_forward.1} parent=1 // pred_region
      _
    $region25: #{ho_model_forward.1} parent=1 // pred_fallthru
      _
    // Predicated region
    $region26: #{ho_model_forward.1} parent=1 // pred_check
      _
    $region27: #{ho_model_forward.1} parent=1 // pred_check_branch
      %36 = sbr.rel (0) target = $region29
    $region28: #{ho_model_forward.1} parent=1 // pred_region
      %s38 = ssub.s32 8192, 8192
      %39 = vsyncadd [#allocation3], %s38
      %s40 = sshll.u32 [#allocation2], 4
      %s41 = int_to_ptr.vmem [resolvable:$true] %s40
      %46 = dma.hbm_to_vmem [thread:$0]  %s6, 8192, %s41, [#allocation3], 64, 64, 4
    $region29: #{ho_model_forward.1} parent=1 // pred_fallthru
      _
    // Predicated region
    $region30: #{ho_model_forward.1} parent=1 // pred_check
      _
    $region31: #{ho_model_forward.1} parent=1 // pred_check_branch
      %48 = sbr.rel (0) target = $region33
    $region32: #{ho_model_forward.1} parent=1 // pred_region
      _
    $region33: #{ho_model_forward.1} parent=1 // pred_fallthru
      _
    // Predicated region
    $region34: #{ho_model_forward.1} parent=1 // pred_check
      _
    $region35: #{ho_model_forward.1} parent=1 // pred_check_branch
      %50 = sbr.rel (0) target = $region37
    $region36: #{ho_model_forward.1} parent=1 // pred_region
      _
    $region37: #{ho_model_forward.1} parent=1 // pred_fallthru
      _
    // Predicated region
    $region38: #{ho_model_forward.1} parent=1 // pred_check
      _
    $region39: #{ho_model_forward.1} parent=1 // pred_check_branch
      %52 = sbr.rel (0) target = $region41
    $region40: #{ho_model_forward.1} parent=1 // pred_region
      _
    $region41: #{ho_model_forward.1} parent=1 // pred_fallthru
      _
    // Predicated region
    $region42: #{ho_model_forward.1} parent=1 // pred_check
      _
    $region43: #{ho_model_forward.1} parent=1 // pred_check_branch
      %54 = sbr.rel (0) target = $region45
    $region44: #{ho_model_forward.1} parent=1 // pred_region
      _
    $region45: #{ho_model_forward.1} parent=1 // pred_fallthru
      _
    // Predicated region
    $region46: #{ho_model_forward.1} parent=1 // pred_check
      _
    $region47: #{ho_model_forward.1} parent=1 // pred_check_branch
      %56 = sbr.rel (0) target = $region49
    $region48: #{ho_model_forward.1} parent=1 // pred_region
      %s58 = ssub.s32 2304, 2304
      %59 = vsyncadd [#allocation6], %s58
      %s60 = sshll.u32 [#allocation5], 4
      %s61 = int_to_ptr.vmem [resolvable:$true] %s60
      %66 = dma.hbm_to_vmem [thread:$0]  %s11, 2304, %s61, [#allocation6], 384, 384, 24
    $region49: #{ho_model_forward.1} parent=1 // pred_fallthru
      _
    // Predicated region
    $region50: #{ho_model_forward.1} parent=1 // pred_check
      _
    $region51: #{ho_model_forward.1} parent=1 // pred_check_branch
      %68 = sbr.rel (0) target = $region53
    $region52: #{ho_model_forward.1} parent=1 // pred_region
      %s70 = ssub.s32 3072, 3072
      %71 = vsyncadd [#allocation6], %s70
      %s72 = sshll.u32 [#allocation7], 4
      %s73 = int_to_ptr.vmem [resolvable:$true] %s72
      %78 = dma.hbm_to_vmem [thread:$0]  %s12, 3072, %s73, [#allocation6], 384, 384, 24
    $region53: #{ho_model_forward.1} parent=1 // pred_fallthru
      _
    // Predicated region
    $region54: #{ho_model_forward.1} parent=1 // pred_check
      _
    $region55: #{ho_model_forward.1} parent=1 // pred_check_branch
      %80 = sbr.rel (0) target = $region57
    $region56: #{ho_model_forward.1} parent=1 // pred_region
      %s82 = ssub.s32 768, 768
      %83 = vsyncadd [#allocation9], %s82
      %s84 = sshll.u32 [#allocation8], 4
      %s85 = int_to_ptr.vmem [resolvable:$true] %s84
      %90 = dma.hbm_to_vmem [thread:$0]  %s13, 768, %s85, [#allocation9], 384, 384, 24
    $region57: #{ho_model_forward.1} parent=1 // pred_fallthru
      _
    // Predicated region
    $region58: #{ho_model_forward.1} parent=1 // pred_check
      _
    $region59: #{ho_model_forward.1} parent=1 // pred_check_branch
      %92 = sbr.rel (0) target = $region61
    $region60: #{ho_model_forward.1} parent=1 // pred_region
      %93 = dma.done [#allocation3], 8192
    $region61: #{ho_model_forward.1} parent=1 // pred_fallthru
      _
    // Predicated region
    $region62: #{ho_model_forward.1} parent=1 // pred_check
      _
    $region63: #{ho_model_forward.1} parent=1 // pred_check_branch
      %95 = sbr.rel (0) target = $region65
    $region64: #{ho_model_forward.1} parent=1 // pred_region
      %96 = dma.done [#allocation6], 2304
    $region65: #{ho_model_forward.1} parent=1 // pred_fallthru
      _
    // Predicated region
    $region66: #{ho_model_forward.1} parent=1 // pred_check
      _
    $region67: #{ho_model_forward.1} parent=1 // pred_check_branch
      %98 = sbr.rel (0) target = $region69
    $region68: #{ho_model_forward.1} parent=1 // pred_region
      %99 = dma.done [#allocation6], 3072
    $region69: #{ho_model_forward.1} parent=1 // pred_fallthru
      _
    // Predicated region
    $region70: #{ho_model_forward.1} parent=1 // pred_check
      _
    $region71: #{ho_model_forward.1} parent=1 // pred_check_branch
      %101 = sbr.rel (0) target = $region73
    $region72: #{ho_model_forward.1} parent=1 // pred_region
      %102 = dma.done [#allocation9], 768
    $region73: #{ho_model_forward.1} parent=1 // pred_fallthru
      _
    %v104 = vld [vmem:[%s0] sm:$0xff]
    %v105 = vld [vmem:[%s0 + $0x8] sm:$0xff]
    %v108 = vcombine.high %v104, %v104
    %v110 = vunpack.c.l.s4 1983009808
    %v111 = vunpack.c.0.s8 %v110
    %v112 = vlaneseq
    %v113 = vshrl.u32 %v112, 7
    %v114 = vsub.s32 %v111, %v113
    %v115 = vrot.slane %v104, %v114
    %v117 = vunpack.c.l.s4 1983009808
    %v118 = vunpack.c.0.s8 %v117
    %v119 = vlaneseq
    %v120 = vshrl.u32 %v119, 7
    %v121 = vsub.s32 %v118, %v120
    %v122 = vrot.slane %v108, %v121
    %v123 = vcombine.high %v115, %v115
    %v124 = vcombine.high %v122, %v122
    %v125 = vcombine.high %v105, %v105
    %v127 = vunpack.c.l.s4 1983009808
    %v128 = vunpack.c.0.s8 %v127
    %v129 = vlaneseq
    %v130 = vshrl.u32 %v129, 7
    %v131 = vsub.s32 %v128, %v130
    %v132 = vrot.slane %v105, %v131
    %v134 = vunpack.c.l.s4 1983009808
    %v135 = vunpack.c.0.s8 %v134
    %v136 = vlaneseq
    %v137 = vshrl.u32 %v136, 7
    %v138 = vsub.s32 %v135, %v137
    %v139 = vrot.slane %v125, %v138
    %v140 = vcombine.high %v132, %v132
    %v141 = vcombine.high %v139, %v139
    %v150 = vpack.c.bf16 %v115, %v115
    %v151 = vpack.c.bf16 %v123, %v123
    %v152 = vpack.c.bf16 %v122, %v122
    %v153 = vpack.c.bf16 %v124, %v124
    %v154 = vpack.c.bf16 %v132, %v132
    %v155 = vpack.c.bf16 %v140, %v140
    %v156 = vpack.c.bf16 %v139, %v139
    %v157 = vpack.c.bf16 %v141, %v141
    %v158 = vld [vmem:[#allocation2] sm:$0xf]
    %v159 = vld [vmem:[#allocation2 + $0x4] sm:$0xf]
    %v160 = vld [vmem:[#allocation2 + $0x8] sm:$0xf]
    %v161 = vld [vmem:[#allocation2 + $0xc] sm:$0xf]
    %v162 = vld [vmem:[#allocation2 + $0x10] sm:$0xf]
    %v163 = vld [vmem:[#allocation2 + $0x14] sm:$0xf]
    %v164 = vld [vmem:[#allocation2 + $0x18] sm:$0xf]
    %v165 = vld [vmem:[#allocation2 + $0x1c] sm:$0xf]
    %v166 = vld [vmem:[#allocation2 + $0x20] sm:$0xf]
    %v167 = vld [vmem:[#allocation2 + $0x24] sm:$0xf]
    %v168 = vld [vmem:[#allocation2 + $0x28] sm:$0xf]
    %v169 = vld [vmem:[#allocation2 + $0x2c] sm:$0xf]
    %v170 = vld [vmem:[#allocation2 + $0x30] sm:$0xf]
    %v171 = vld [vmem:[#allocation2 + $0x34] sm:$0xf]
    %v172 = vld [vmem:[#allocation2 + $0x38] sm:$0xf]
    %v173 = vld [vmem:[#allocation2 + $0x3c] sm:$0xf]
    %v174 = vld [vmem:[#allocation2 + $0x40] sm:$0xf]
    %v175 = vld [vmem:[#allocation2 + $0x44] sm:$0xf]
    %v176 = vld [vmem:[#allocation2 + $0x48] sm:$0xf]
    %v177 = vld [vmem:[#allocation2 + $0x4c] sm:$0xf]
    %v178 = vld [vmem:[#allocation2 + $0x50] sm:$0xf]
    %v179 = vld [vmem:[#allocation2 + $0x54] sm:$0xf]
    %v180 = vld [vmem:[#allocation2 + $0x58] sm:$0xf]
    %v181 = vld [vmem:[#allocation2 + $0x5c] sm:$0xf]
    %v182 = vld [vmem:[#allocation2 + $0x60] sm:$0xf]
    %v183 = vld [vmem:[#allocation2 + $0x64] sm:$0xf]
    %v184 = vld [vmem:[#allocation2 + $0x68] sm:$0xf]
    %v185 = vld [vmem:[#allocation2 + $0x6c] sm:$0xf]
    %v186 = vld [vmem:[#allocation2 + $0x70] sm:$0xf]
    %v187 = vld [vmem:[#allocation2 + $0x74] sm:$0xf]
    %v188 = vld [vmem:[#allocation2 + $0x78] sm:$0xf]
    %v189 = vld [vmem:[#allocation2 + $0x7c] sm:$0xf]
    %v190 = vld [vmem:[#allocation2 + $0x80] sm:$0xf]
    %v191 = vld [vmem:[#allocation2 + $0x84] sm:$0xf]
    %v192 = vld [vmem:[#allocation2 + $0x88] sm:$0xf]
    %v193 = vld [vmem:[#allocation2 + $0x8c] sm:$0xf]
    %v194 = vld [vmem:[#allocation2 + $0x90] sm:$0xf]
    %v195 = vld [vmem:[#allocation2 + $0x94] sm:$0xf]
    %v196 = vld [vmem:[#allocation2 + $0x98] sm:$0xf]
    %v197 = vld [vmem:[#allocation2 + $0x9c] sm:$0xf]
    %v198 = vld [vmem:[#allocation2 + $0xa0] sm:$0xf]
    %v199 = vld [vmem:[#allocation2 + $0xa4] sm:$0xf]
    %v200 = vld [vmem:[#allocation2 + $0xa8] sm:$0xf]
    %v201 = vld [vmem:[#allocation2 + $0xac] sm:$0xf]
    %v202 = vld [vmem:[#allocation2 + $0xb0] sm:$0xf]
    %v203 = vld [vmem:[#allocation2 + $0xb4] sm:$0xf]
    %v204 = vld [vmem:[#allocation2 + $0xb8] sm:$0xf]
    %v205 = vld [vmem:[#allocation2 + $0xbc] sm:$0xf]
    %v206 = vld [vmem:[#allocation2 + $0xc0] sm:$0xf]
    %v207 = vld [vmem:[#allocation2 + $0xc4] sm:$0xf]
    %v208 = vld [vmem:[#allocation2 + $0xc8] sm:$0xf]
    %v209 = vld [vmem:[#allocation2 + $0xcc] sm:$0xf]
    %v210 = vld [vmem:[#allocation2 + $0xd0] sm:$0xf]
    %v211 = vld [vmem:[#allocation2 + $0xd4] sm:$0xf]
    %v212 = vld [vmem:[#allocation2 + $0xd8] sm:$0xf]
    %v213 = vld [vmem:[#allocation2 + $0xdc] sm:$0xf]
    %v214 = vld [vmem:[#allocation2 + $0xe0] sm:$0xf]
    %v215 = vld [vmem:[#allocation2 + $0xe4] sm:$0xf]
    %v216 = vld [vmem:[#allocation2 + $0xe8] sm:$0xf]
    %v217 = vld [vmem:[#allocation2 + $0xec] sm:$0xf]
    %v218 = vld [vmem:[#allocation2 + $0xf0] sm:$0xf]
    %v219 = vld [vmem:[#allocation2 + $0xf4] sm:$0xf]
    %v220 = vld [vmem:[#allocation2 + $0xf8] sm:$0xf]
    %v221 = vld [vmem:[#allocation2 + $0xfc] sm:$0xf]
    %v222 = vld [vmem:[#allocation2 + $0x100] sm:$0xf]
    %v223 = vld [vmem:[#allocation2 + $0x104] sm:$0xf]
    %v224 = vld [vmem:[#allocation2 + $0x108] sm:$0xf]
    %v225 = vld [vmem:[#allocation2 + $0x10c] sm:$0xf]
    %v226 = vld [vmem:[#allocation2 + $0x110] sm:$0xf]
    %v227 = vld [vmem:[#allocation2 + $0x114] sm:$0xf]
    %v228 = vld [vmem:[#allocation2 + $0x118] sm:$0xf]
    %v229 = vld [vmem:[#allocation2 + $0x11c] sm:$0xf]
    %v230 = vld [vmem:[#allocation2 + $0x120] sm:$0xf]
    %v231 = vld [vmem:[#allocation2 + $0x124] sm:$0xf]
    %v232 = vld [vmem:[#allocation2 + $0x128] sm:$0xf]
    %v233 = vld [vmem:[#allocation2 + $0x12c] sm:$0xf]
    %v234 = vld [vmem:[#allocation2 + $0x130] sm:$0xf]
    %v235 = vld [vmem:[#allocation2 + $0x134] sm:$0xf]
    %v236 = vld [vmem:[#allocation2 + $0x138] sm:$0xf]
    %v237 = vld [vmem:[#allocation2 + $0x13c] sm:$0xf]
    %v238 = vld [vmem:[#allocation2 + $0x140] sm:$0xf]
    %v239 = vld [vmem:[#allocation2 + $0x144] sm:$0xf]
    %v240 = vld [vmem:[#allocation2 + $0x148] sm:$0xf]
    %v241 = vld [vmem:[#allocation2 + $0x14c] sm:$0xf]
    %v242 = vld [vmem:[#allocation2 + $0x150] sm:$0xf]
    %v243 = vld [vmem:[#allocation2 + $0x154] sm:$0xf]
    %v244 = vld [vmem:[#allocation2 + $0x158] sm:$0xf]
    %v245 = vld [vmem:[#allocation2 + $0x15c] sm:$0xf]
    %v246 = vld [vmem:[#allocation2 + $0x160] sm:$0xf]
    %v247 = vld [vmem:[#allocation2 + $0x164] sm:$0xf]
    %v248 = vld [vmem:[#allocation2 + $0x168] sm:$0xf]
    %v249 = vld [vmem:[#allocation2 + $0x16c] sm:$0xf]
    %v250 = vld [vmem:[#allocation2 + $0x170] sm:$0xf]
    %v251 = vld [vmem:[#allocation2 + $0x174] sm:$0xf]
    %v252 = vld [vmem:[#allocation2 + $0x178] sm:$0xf]
    %v253 = vld [vmem:[#allocation2 + $0x17c] sm:$0xf]
    %v254 = vld [vmem:[#allocation2 + $0x180] sm:$0xf]
    %v255 = vld [vmem:[#allocation2 + $0x184] sm:$0xf]
    %v256 = vld [vmem:[#allocation2 + $0x188] sm:$0xf]
    %v257 = vld [vmem:[#allocation2 + $0x18c] sm:$0xf]
    %v258 = vld [vmem:[#allocation2 + $0x190] sm:$0xf]
    %v259 = vld [vmem:[#allocation2 + $0x194] sm:$0xf]
    %v260 = vld [vmem:[#allocation2 + $0x198] sm:$0xf]
    %v261 = vld [vmem:[#allocation2 + $0x19c] sm:$0xf]
    %v262 = vld [vmem:[#allocation2 + $0x1a0] sm:$0xf]
    %v263 = vld [vmem:[#allocation2 + $0x1a4] sm:$0xf]
    %v264 = vld [vmem:[#allocation2 + $0x1a8] sm:$0xf]
    %v265 = vld [vmem:[#allocation2 + $0x1ac] sm:$0xf]
    %v266 = vld [vmem:[#allocation2 + $0x1b0] sm:$0xf]
    %v267 = vld [vmem:[#allocation2 + $0x1b4] sm:$0xf]
    %v268 = vld [vmem:[#allocation2 + $0x1b8] sm:$0xf]
    %v269 = vld [vmem:[#allocation2 + $0x1bc] sm:$0xf]
    %v270 = vld [vmem:[#allocation2 + $0x1c0] sm:$0xf]
    %v271 = vld [vmem:[#allocation2 + $0x1c4] sm:$0xf]
    %v272 = vld [vmem:[#allocation2 + $0x1c8] sm:$0xf]
    %v273 = vld [vmem:[#allocation2 + $0x1cc] sm:$0xf]
    %v274 = vld [vmem:[#allocation2 + $0x1d0] sm:$0xf]
    %v275 = vld [vmem:[#allocation2 + $0x1d4] sm:$0xf]
    %v276 = vld [vmem:[#allocation2 + $0x1d8] sm:$0xf]
    %v277 = vld [vmem:[#allocation2 + $0x1dc] sm:$0xf]
    %v278 = vld [vmem:[#allocation2 + $0x1e0] sm:$0xf]
    %v279 = vld [vmem:[#allocation2 + $0x1e4] sm:$0xf]
    %v280 = vld [vmem:[#allocation2 + $0x1e8] sm:$0xf]
    %v281 = vld [vmem:[#allocation2 + $0x1ec] sm:$0xf]
    %v282 = vld [vmem:[#allocation2 + $0x1f0] sm:$0xf]
    %v283 = vld [vmem:[#allocation2 + $0x1f4] sm:$0xf]
    %v284 = vld [vmem:[#allocation2 + $0x1f8] sm:$0xf]
    %v285 = vld [vmem:[#allocation2 + $0x1fc] sm:$0xf]
    %v286 = vld [vmem:[%s1] sm:$0x3]
    %v287 = vpack.c.bf16 %v286, %v286
    %v288 = vld [vmem:[%s7] sm:$0xf]
    %vm289 = vcmask 64512
    %v291 = vsel %vm289, %v287, 0
    %vm293 = vcmask 1043456
    %v295 = vsel %vm293, %v288, 0
    %297 = vmatprep.subr.bf16.mxu0 0
    %298 = vmatpush1.bf16.msra.mxu0 %v295
    %299 = vmatprep.subr.bf16.mxu0 0
    %300 = vmatpush1.bf16.msra.mxu0 0
    %301 = vmatprep.subr.bf16.mxu0 0
    %302 = vmatpush1.bf16.msra.mxu0 0
    %303 = vmatprep.subr.bf16.mxu0 0
    %304 = vmatpush1.bf16.msra.mxu0 0
    %305 = vmatprep.subr.bf16.mxu0 0
    %306 = vmatpush1.bf16.msra.mxu0 0
    %307 = vmatprep.subr.bf16.mxu0 0
    %308 = vmatpush1.bf16.msra.mxu0 0
    %309 = vmatprep.subr.bf16.mxu0 0
    %310 = vmatpush1.bf16.msra.mxu0 0
    %311 = vmatprep.subr.bf16.mxu0 0
    %312 = vmatpush1.bf16.msra.mxu0 0
    %313 = vmatprep.subr.bf16.mxu0 0
    %314 = vmatpush1.bf16.msra.mxu0 0
    %315 = vmatprep.subr.bf16.mxu0 0
    %316 = vmatpush1.bf16.msra.mxu0 0
    %317 = vmatprep.subr.bf16.mxu0 0
    %318 = vmatpush1.bf16.msra.mxu0 0
    %319 = vmatprep.subr.bf16.mxu0 0
    %320 = vmatpush1.bf16.msra.mxu0 0
    %321 = vmatprep.subr.bf16.mxu0 0
    %322 = vmatpush1.bf16.msra.mxu0 0
    %323 = vmatprep.subr.bf16.mxu0 0
    %324 = vmatpush1.bf16.msra.mxu0 0
    %325 = vmatprep.subr.bf16.mxu0 0
    %326 = vmatpush1.bf16.msra.mxu0 0
    %327 = vmatprep.subr.bf16.mxu0 0
    %328 = vmatpush1.bf16.msra.mxu0 0
    %329 = vmatprep.mubr.bf16.mxu0 0
    %330 = vmatmul.mubr.bf16.gmra.mrb[0].mxu0 %v291
    %v331 = vpop.f32.mrb[0].mxu0
    %v332 = vadd.f32 0.0, %v331
    %v333 = vpop.f32.mrb[0].mxu0
    %v334 = vpop.f32.mrb[0].mxu0
    %v335 = vpop.f32.mrb[0].mxu0
    %336 = vdwg.mxu0
    %v465 = vunpack.c.l.b16 %v158
    %v466 = vunpack.c.l.b16 %v159
    %v467 = vunpack.c.l.b16 %v160
    %v468 = vunpack.c.l.b16 %v161
    %v469 = vunpack.c.l.b16 %v162
    %v470 = vunpack.c.l.b16 %v163
    %v471 = vunpack.c.l.b16 %v164
    %v472 = vunpack.c.l.b16 %v165
    %v473 = vunpack.c.l.b16 %v166
    %v474 = vunpack.c.l.b16 %v167
    %v475 = vunpack.c.l.b16 %v168
    %v476 = vunpack.c.l.b16 %v169
    %v477 = vunpack.c.l.b16 %v170
    %v478 = vunpack.c.l.b16 %v171
    %v479 = vunpack.c.l.b16 %v172
    %v480 = vunpack.c.l.b16 %v173
    %v481 = vunpack.c.l.b16 %v174
    %v482 = vunpack.c.l.b16 %v175
    %v483 = vunpack.c.l.b16 %v176
    %v484 = vunpack.c.l.b16 %v177
    %v485 = vunpack.c.l.b16 %v178
    %v486 = vunpack.c.l.b16 %v179
    %v487 = vunpack.c.l.b16 %v180
    %v488 = vunpack.c.l.b16 %v181
    %v489 = vunpack.c.l.b16 %v182
    %v490 = vunpack.c.l.b16 %v183
    %v491 = vunpack.c.l.b16 %v184
    %v492 = vunpack.c.l.b16 %v185
    %v493 = vunpack.c.l.b16 %v186
    %v494 = vunpack.c.l.b16 %v187
    %v495 = vunpack.c.l.b16 %v188
    %v496 = vunpack.c.l.b16 %v189
    %v497 = vunpack.c.l.b16 %v190
    %v498 = vunpack.c.l.b16 %v191
    %v499 = vunpack.c.l.b16 %v192
    %v500 = vunpack.c.l.b16 %v193
    %v501 = vunpack.c.l.b16 %v194
    %v502 = vunpack.c.l.b16 %v195
    %v503 = vunpack.c.l.b16 %v196
    %v504 = vunpack.c.l.b16 %v197
    %v505 = vunpack.c.l.b16 %v198
    %v506 = vunpack.c.l.b16 %v199
    %v507 = vunpack.c.l.b16 %v200
    %v508 = vunpack.c.l.b16 %v201
    %v509 = vunpack.c.l.b16 %v202
    %v510 = vunpack.c.l.b16 %v203
    %v511 = vunpack.c.l.b16 %v204
    %v512 = vunpack.c.l.b16 %v205
    %v513 = vunpack.c.l.b16 %v206
    %v514 = vunpack.c.l.b16 %v207
    %v515 = vunpack.c.l.b16 %v208
    %v516 = vunpack.c.l.b16 %v209
    %v517 = vunpack.c.l.b16 %v210
    %v518 = vunpack.c.l.b16 %v211
    %v519 = vunpack.c.l.b16 %v212
    %v520 = vunpack.c.l.b16 %v213
    %v521 = vunpack.c.l.b16 %v214
    %v522 = vunpack.c.l.b16 %v215
    %v523 = vunpack.c.l.b16 %v216
    %v524 = vunpack.c.l.b16 %v217
    %v525 = vunpack.c.l.b16 %v218
    %v526 = vunpack.c.l.b16 %v219
    %v527 = vunpack.c.l.b16 %v220
    %v528 = vunpack.c.l.b16 %v221
    %v529 = vunpack.c.l.b16 %v222
    %v530 = vunpack.c.l.b16 %v223
    %v531 = vunpack.c.l.b16 %v224
    %v532 = vunpack.c.l.b16 %v225
    %v533 = vunpack.c.l.b16 %v226
    %v534 = vunpack.c.l.b16 %v227
    %v535 = vunpack.c.l.b16 %v228
    %v536 = vunpack.c.l.b16 %v229
    %v537 = vunpack.c.l.b16 %v230
    %v538 = vunpack.c.l.b16 %v231
    %v539 = vunpack.c.l.b16 %v232
    %v540 = vunpack.c.l.b16 %v233
    %v541 = vunpack.c.l.b16 %v234
    %v542 = vunpack.c.l.b16 %v235
    %v543 = vunpack.c.l.b16 %v236
    %v544 = vunpack.c.l.b16 %v237
    %v545 = vunpack.c.l.b16 %v238
    %v546 = vunpack.c.l.b16 %v239
    %v547 = vunpack.c.l.b16 %v240
    %v548 = vunpack.c.l.b16 %v241
    %v549 = vunpack.c.l.b16 %v242
    %v550 = vunpack.c.l.b16 %v243
    %v551 = vunpack.c.l.b16 %v244
    %v552 = vunpack.c.l.b16 %v245
    %v553 = vunpack.c.l.b16 %v246
    %v554 = vunpack.c.l.b16 %v247
    %v555 = vunpack.c.l.b16 %v248
    %v556 = vunpack.c.l.b16 %v249
    %v557 = vunpack.c.l.b16 %v250
    %v558 = vunpack.c.l.b16 %v251
    %v559 = vunpack.c.l.b16 %v252
    %v560 = vunpack.c.l.b16 %v253
    %v561 = vunpack.c.l.b16 %v254
    %v562 = vunpack.c.l.b16 %v255
    %v563 = vunpack.c.l.b16 %v256
    %v564 = vunpack.c.l.b16 %v257
    %v565 = vunpack.c.l.b16 %v258
    %v566 = vunpack.c.l.b16 %v259
    %v567 = vunpack.c.l.b16 %v260
    %v568 = vunpack.c.l.b16 %v261
    %v569 = vunpack.c.l.b16 %v262
    %v570 = vunpack.c.l.b16 %v263
    %v571 = vunpack.c.l.b16 %v264
    %v572 = vunpack.c.l.b16 %v265
    %v573 = vunpack.c.l.b16 %v266
    %v574 = vunpack.c.l.b16 %v267
    %v575 = vunpack.c.l.b16 %v268
    %v576 = vunpack.c.l.b16 %v269
    %v577 = vunpack.c.l.b16 %v270
    %v578 = vunpack.c.l.b16 %v271
    %v579 = vunpack.c.l.b16 %v272
    %v580 = vunpack.c.l.b16 %v273
    %v581 = vunpack.c.l.b16 %v274
    %v582 = vunpack.c.l.b16 %v275
    %v583 = vunpack.c.l.b16 %v276
    %v584 = vunpack.c.l.b16 %v277
    %v585 = vunpack.c.l.b16 %v278
    %v586 = vunpack.c.l.b16 %v279
    %v587 = vunpack.c.l.b16 %v280
    %v588 = vunpack.c.l.b16 %v281
    %v589 = vunpack.c.l.b16 %v282
    %v590 = vunpack.c.l.b16 %v283
    %v591 = vunpack.c.l.b16 %v284
    %v592 = vunpack.c.l.b16 %v285
    %v593 = vpack.c.b16 %v466, %v465
    %v594 = vpack.c.b16 %v468, %v467
    %v595 = vpack.c.b16 %v470, %v469
    %v596 = vpack.c.b16 %v472, %v471
    %v597 = vpack.c.b16 %v474, %v473
    %v598 = vpack.c.b16 %v476, %v475
    %v599 = vpack.c.b16 %v478, %v477
    %v600 = vpack.c.b16 %v480, %v479
    %v601 = vpack.c.b16 %v482, %v481
    %v602 = vpack.c.b16 %v484, %v483
    %v603 = vpack.c.b16 %v486, %v485
    %v604 = vpack.c.b16 %v488, %v487
    %v605 = vpack.c.b16 %v490, %v489
    %v606 = vpack.c.b16 %v492, %v491
    %v607 = vpack.c.b16 %v494, %v493
    %v608 = vpack.c.b16 %v496, %v495
    %v609 = vpack.c.b16 %v498, %v497
    %v610 = vpack.c.b16 %v500, %v499
    %v611 = vpack.c.b16 %v502, %v501
    %v612 = vpack.c.b16 %v504, %v503
    %v613 = vpack.c.b16 %v506, %v505
    %v614 = vpack.c.b16 %v508, %v507
    %v615 = vpack.c.b16 %v510, %v509
    %v616 = vpack.c.b16 %v512, %v511
    %v617 = vpack.c.b16 %v514, %v513
    %v618 = vpack.c.b16 %v516, %v515
    %v619 = vpack.c.b16 %v518, %v517
    %v620 = vpack.c.b16 %v520, %v519
    %v621 = vpack.c.b16 %v522, %v521
    %v622 = vpack.c.b16 %v524, %v523
    %v623 = vpack.c.b16 %v526, %v525
    %v624 = vpack.c.b16 %v528, %v527
    %v625 = vpack.c.b16 %v530, %v529
    %v626 = vpack.c.b16 %v532, %v531
    %v627 = vpack.c.b16 %v534, %v533
    %v628 = vpack.c.b16 %v536, %v535
    %v629 = vpack.c.b16 %v538, %v537
    %v630 = vpack.c.b16 %v540, %v539
    %v631 = vpack.c.b16 %v542, %v541
    %v632 = vpack.c.b16 %v544, %v543
    %v633 = vpack.c.b16 %v546, %v545
    %v634 = vpack.c.b16 %v548, %v547
    %v635 = vpack.c.b16 %v550, %v549
    %v636 = vpack.c.b16 %v552, %v551
    %v637 = vpack.c.b16 %v554, %v553
    %v638 = vpack.c.b16 %v556, %v555
    %v639 = vpack.c.b16 %v558, %v557
    %v640 = vpack.c.b16 %v560, %v559
    %v641 = vpack.c.b16 %v562, %v561
    %v642 = vpack.c.b16 %v564, %v563
    %v643 = vpack.c.b16 %v566, %v565
    %v644 = vpack.c.b16 %v568, %v567
    %v645 = vpack.c.b16 %v570, %v569
    %v646 = vpack.c.b16 %v572, %v571
    %v647 = vpack.c.b16 %v574, %v573
    %v648 = vpack.c.b16 %v576, %v575
    %v649 = vpack.c.b16 %v578, %v577
    %v650 = vpack.c.b16 %v580, %v579
    %v651 = vpack.c.b16 %v582, %v581
    %v652 = vpack.c.b16 %v584, %v583
    %v653 = vpack.c.b16 %v586, %v585
    %v654 = vpack.c.b16 %v588, %v587
    %v655 = vpack.c.b16 %v590, %v589
    %v656 = vpack.c.b16 %v592, %v591
    %721 = vmatprep.subr.bf16.mxu0 0
    %722 = vmatpush1.bf16.msra.mxu0 %v593
    %723 = vmatprep.subr.bf16.mxu0 0
    %724 = vmatpush1.bf16.msra.mxu0 %v594
    %725 = vmatprep.subr.bf16.mxu0 0
    %726 = vmatpush1.bf16.msra.mxu0 %v595
    %727 = vmatprep.subr.bf16.mxu0 0
    %728 = vmatpush1.bf16.msra.mxu0 %v596
    %729 = vmatprep.subr.bf16.mxu0 0
    %730 = vmatpush1.bf16.msra.mxu0 %v597
    %731 = vmatprep.subr.bf16.mxu0 0
    %732 = vmatpush1.bf16.msra.mxu0 %v598
    %733 = vmatprep.subr.bf16.mxu0 0
    %734 = vmatpush1.bf16.msra.mxu0 %v599
    %735 = vmatprep.subr.bf16.mxu0 0
    %736 = vmatpush1.bf16.msra.mxu0 %v600
    %737 = vmatprep.subr.bf16.mxu0 0
    %738 = vmatpush1.bf16.msra.mxu0 %v601
    %739 = vmatprep.subr.bf16.mxu0 0
    %740 = vmatpush1.bf16.msra.mxu0 %v602
    %741 = vmatprep.subr.bf16.mxu0 0
    %742 = vmatpush1.bf16.msra.mxu0 %v603
    %743 = vmatprep.subr.bf16.mxu0 0
    %744 = vmatpush1.bf16.msra.mxu0 %v604
    %745 = vmatprep.subr.bf16.mxu0 0
    %746 = vmatpush1.bf16.msra.mxu0 %v605
    %747 = vmatprep.subr.bf16.mxu0 0
    %748 = vmatpush1.bf16.msra.mxu0 %v606
    %749 = vmatprep.subr.bf16.mxu0 0
    %750 = vmatpush1.bf16.msra.mxu0 %v607
    %751 = vmatprep.subr.bf16.mxu0 0
    %752 = vmatpush1.bf16.msra.mxu0 %v608
    %753 = vmatprep.mubr.bf16.mxu0 %v151
    %754 = vmatmul.mubr.bf16.gmra.mrb[0].mxu0 %v150
    %v755 = vpop.f32.mrb[0].mxu0
    %v756 = vadd.f32 %v332, %v755
    %v757 = vpop.f32.mrb[0].mxu0
    %v758 = vpop.f32.mrb[0].mxu0
    %v759 = vpop.f32.mrb[0].mxu0
    %760 = vdwg.mxu0
    %761 = vmatprep.subr.bf16.mxu0 0
    %762 = vmatpush1.bf16.msra.mxu0 %v609
    %763 = vmatprep.subr.bf16.mxu0 0
    %764 = vmatpush1.bf16.msra.mxu0 %v610
    %765 = vmatprep.subr.bf16.mxu0 0
    %766 = vmatpush1.bf16.msra.mxu0 %v611
    %767 = vmatprep.subr.bf16.mxu0 0
    %768 = vmatpush1.bf16.msra.mxu0 %v612
    %769 = vmatprep.subr.bf16.mxu0 0
    %770 = vmatpush1.bf16.msra.mxu0 %v613
    %771 = vmatprep.subr.bf16.mxu0 0
    %772 = vmatpush1.bf16.msra.mxu0 %v614
    %773 = vmatprep.subr.bf16.mxu0 0
    %774 = vmatpush1.bf16.msra.mxu0 %v615
    %775 = vmatprep.subr.bf16.mxu0 0
    %776 = vmatpush1.bf16.msra.mxu0 %v616
    %777 = vmatprep.subr.bf16.mxu0 0
    %778 = vmatpush1.bf16.msra.mxu0 %v617
    %779 = vmatprep.subr.bf16.mxu0 0
    %780 = vmatpush1.bf16.msra.mxu0 %v618
    %781 = vmatprep.subr.bf16.mxu0 0
    %782 = vmatpush1.bf16.msra.mxu0 %v619
    %783 = vmatprep.subr.bf16.mxu0 0
    %784 = vmatpush1.bf16.msra.mxu0 %v620
    %785 = vmatprep.subr.bf16.mxu0 0
    %786 = vmatpush1.bf16.msra.mxu0 %v621
    %787 = vmatprep.subr.bf16.mxu0 0
    %788 = vmatpush1.bf16.msra.mxu0 %v622
    %789 = vmatprep.subr.bf16.mxu0 0
    %790 = vmatpush1.bf16.msra.mxu0 %v623
    %791 = vmatprep.subr.bf16.mxu0 0
    %792 = vmatpush1.bf16.msra.mxu0 %v624
    %793 = vmatprep.mubr.bf16.mxu0 %v153
    %794 = vmatmul.mubr.bf16.gmra.mrb[0].mxu0 %v152
    %v795 = vpop.f32.mrb[0].mxu0
    %v796 = vadd.f32 %v756, %v795
    %v797 = vpop.f32.mrb[0].mxu0
    %v798 = vpop.f32.mrb[0].mxu0
    %v799 = vpop.f32.mrb[0].mxu0
    %800 = vdwg.mxu0
    %801 = vmatprep.subr.bf16.mxu0 0
    %802 = vmatpush1.bf16.msra.mxu0 %v625
    %803 = vmatprep.subr.bf16.mxu0 0
    %804 = vmatpush1.bf16.msra.mxu0 %v626
    %805 = vmatprep.subr.bf16.mxu0 0
    %806 = vmatpush1.bf16.msra.mxu0 %v627
    %807 = vmatprep.subr.bf16.mxu0 0
    %808 = vmatpush1.bf16.msra.mxu0 %v628
    %809 = vmatprep.subr.bf16.mxu0 0
    %810 = vmatpush1.bf16.msra.mxu0 %v629
    %811 = vmatprep.subr.bf16.mxu0 0
    %812 = vmatpush1.bf16.msra.mxu0 %v630
    %813 = vmatprep.subr.bf16.mxu0 0
    %814 = vmatpush1.bf16.msra.mxu0 %v631
    %815 = vmatprep.subr.bf16.mxu0 0
    %816 = vmatpush1.bf16.msra.mxu0 %v632
    %817 = vmatprep.subr.bf16.mxu0 0
    %818 = vmatpush1.bf16.msra.mxu0 %v633
    %819 = vmatprep.subr.bf16.mxu0 0
    %820 = vmatpush1.bf16.msra.mxu0 %v634
    %821 = vmatprep.subr.bf16.mxu0 0
    %822 = vmatpush1.bf16.msra.mxu0 %v635
    %823 = vmatprep.subr.bf16.mxu0 0
    %824 = vmatpush1.bf16.msra.mxu0 %v636
    %825 = vmatprep.subr.bf16.mxu0 0
    %826 = vmatpush1.bf16.msra.mxu0 %v637
    %827 = vmatprep.subr.bf16.mxu0 0
    %828 = vmatpush1.bf16.msra.mxu0 %v638
    %829 = vmatprep.subr.bf16.mxu0 0
    %830 = vmatpush1.bf16.msra.mxu0 %v639
    %831 = vmatprep.subr.bf16.mxu0 0
    %832 = vmatpush1.bf16.msra.mxu0 %v640
    %833 = vmatprep.mubr.bf16.mxu0 %v155
    %834 = vmatmul.mubr.bf16.gmra.mrb[0].mxu0 %v154
    %v835 = vpop.f32.mrb[0].mxu0
    %v836 = vadd.f32 %v796, %v835
    %v837 = vpop.f32.mrb[0].mxu0
    %v838 = vpop.f32.mrb[0].mxu0
    %v839 = vpop.f32.mrb[0].mxu0
    %840 = vdwg.mxu0
    %841 = vmatprep.subr.bf16.mxu0 0
    %842 = vmatpush1.bf16.msra.mxu0 %v641
    %843 = vmatprep.subr.bf16.mxu0 0
    %844 = vmatpush1.bf16.msra.mxu0 %v642
    %845 = vmatprep.subr.bf16.mxu0 0
    %846 = vmatpush1.bf16.msra.mxu0 %v643
    %847 = vmatprep.subr.bf16.mxu0 0
    %848 = vmatpush1.bf16.msra.mxu0 %v644
    %849 = vmatprep.subr.bf16.mxu0 0
    %850 = vmatpush1.bf16.msra.mxu0 %v645
    %851 = vmatprep.subr.bf16.mxu0 0
    %852 = vmatpush1.bf16.msra.mxu0 %v646
    %853 = vmatprep.subr.bf16.mxu0 0
    %854 = vmatpush1.bf16.msra.mxu0 %v647
    %855 = vmatprep.subr.bf16.mxu0 0
    %856 = vmatpush1.bf16.msra.mxu0 %v648
    %857 = vmatprep.subr.bf16.mxu0 0
    %858 = vmatpush1.bf16.msra.mxu0 %v649
    %859 = vmatprep.subr.bf16.mxu0 0
    %860 = vmatpush1.bf16.msra.mxu0 %v650
    %861 = vmatprep.subr.bf16.mxu0 0
    %862 = vmatpush1.bf16.msra.mxu0 %v651
    %863 = vmatprep.subr.bf16.mxu0 0
    %864 = vmatpush1.bf16.msra.mxu0 %v652
    %865 = vmatprep.subr.bf16.mxu0 0
    %866 = vmatpush1.bf16.msra.mxu0 %v653
    %867 = vmatprep.subr.bf16.mxu0 0
    %868 = vmatpush1.bf16.msra.mxu0 %v654
    %869 = vmatprep.subr.bf16.mxu0 0
    %870 = vmatpush1.bf16.msra.mxu0 %v655
    %871 = vmatprep.subr.bf16.mxu0 0
    %872 = vmatpush1.bf16.msra.mxu0 %v656
    %873 = vmatprep.mubr.bf16.mxu0 %v157
    %874 = vmatmul.mubr.bf16.gmra.mrb[0].mxu0 %v156
    %v875 = vpop.f32.mrb[0].mxu0
    %v876 = vadd.f32 %v836, %v875
    %v877 = vpop.f32.mrb[0].mxu0
    %v878 = vpop.f32.mrb[0].mxu0
    %v879 = vpop.f32.mrb[0].mxu0
    %880 = vdwg.mxu0
    %v881 = vld [vmem:[%s8] sm:$0x1]
    %v883 = vlaneseq
    %v884 = vshrl.u32 %v883, 7
    %v885 = vsub.s32 0, %v884
    %v886 = vrot.slane %v881, %v885
    %v888 = vadd.f32 %v876, %v886
    %v889 = vmax.f32 %v888, 0.0
    %v890 = vpack.c.bf16 %v889, %v889
    %v891 = vld [vmem:[%s9] sm:$0xff]
    %v892 = vld [vmem:[%s9 + $0x8] sm:$0xf]
    %v893 = vld [vmem:[%s9 + $0xc] sm:$0xff]
    %v894 = vld [vmem:[%s9 + $0x14] sm:$0xf]
    %v895 = vld [vmem:[%s9 + $0x18] sm:$0xff]
    %v896 = vld [vmem:[%s9 + $0x20] sm:$0xf]
    %v897 = vld [vmem:[%s9 + $0x24] sm:$0xff]
    %v898 = vld [vmem:[%s9 + $0x2c] sm:$0xf]
    %v899 = vld [vmem:[%s9 + $0x30] sm:$0xff]
    %v900 = vld [vmem:[%s9 + $0x38] sm:$0xf]
    %v901 = vld [vmem:[%s9 + $0x3c] sm:$0xff]
    %v902 = vld [vmem:[%s9 + $0x44] sm:$0xf]
    %v903 = vld [vmem:[%s9 + $0x48] sm:$0xff]
    %v904 = vld [vmem:[%s9 + $0x50] sm:$0xf]
    %v905 = vld [vmem:[%s9 + $0x54] sm:$0xff]
    %v906 = vld [vmem:[%s9 + $0x5c] sm:$0xf]
    %v907 = vld [vmem:[%s9 + $0x60] sm:$0xff]
    %v908 = vld [vmem:[%s9 + $0x68] sm:$0xf]
    %v909 = vld [vmem:[%s9 + $0x6c] sm:$0xff]
    %v910 = vld [vmem:[%s9 + $0x74] sm:$0xf]
    %v911 = vld [vmem:[%s9 + $0x78] sm:$0xff]
    %v912 = vld [vmem:[%s9 + $0x80] sm:$0xf]
    %v913 = vld [vmem:[%s9 + $0x84] sm:$0xff]
    %v914 = vld [vmem:[%s9 + $0x8c] sm:$0xf]
    %v915 = vld [vmem:[%s9 + $0x90] sm:$0xff]
    %v916 = vld [vmem:[%s9 + $0x98] sm:$0xf]
    %v917 = vld [vmem:[%s9 + $0x9c] sm:$0xff]
    %v918 = vld [vmem:[%s9 + $0xa4] sm:$0xf]
    %v919 = vld [vmem:[%s9 + $0xa8] sm:$0xff]
    %v920 = vld [vmem:[%s9 + $0xb0] sm:$0xf]
    %v921 = vld [vmem:[%s9 + $0xb4] sm:$0xff]
    %v922 = vld [vmem:[%s9 + $0xbc] sm:$0xf]
    %v923 = vld [vmem:[%s10] sm:$0x7]
    %v925 = vlaneseq
    %v926 = vshrl.u32 %v925, 7
    %v927 = vsub.s32 0, %v926
    %v928 = vrot.slane %v923, %v927
    %v929 = vlaneseq
    %v930 = vshrl.u32 %v929, 7
    %v931 = vsub.s32 1, %v930
    %v932 = vrot.slane %v923, %v931
    %v933 = vlaneseq
    %v934 = vshrl.u32 %v933, 7
    %v935 = vsub.s32 2, %v934
    %v936 = vrot.slane %v923, %v935
    %v972 = vunpack.c.l.b16 %v891
    %v973 = vunpack.c.h.b16 %v891
    %v974 = vunpack.c.l.b16 %v892
    %v975 = vunpack.c.l.b16 %v893
    %v976 = vunpack.c.h.b16 %v893
    %v977 = vunpack.c.l.b16 %v894
    %v978 = vunpack.c.l.b16 %v895
    %v979 = vunpack.c.h.b16 %v895
    %v980 = vunpack.c.l.b16 %v896
    %v981 = vunpack.c.l.b16 %v897
    %v982 = vunpack.c.h.b16 %v897
    %v983 = vunpack.c.l.b16 %v898
    %v984 = vunpack.c.l.b16 %v899
    %v985 = vunpack.c.h.b16 %v899
    %v986 = vunpack.c.l.b16 %v900
    %v987 = vunpack.c.l.b16 %v901
    %v988 = vunpack.c.h.b16 %v901
    %v989 = vunpack.c.l.b16 %v902
    %v990 = vunpack.c.l.b16 %v903
    %v991 = vunpack.c.h.b16 %v903
    %v992 = vunpack.c.l.b16 %v904
    %v993 = vunpack.c.l.b16 %v905
    %v994 = vunpack.c.h.b16 %v905
    %v995 = vunpack.c.l.b16 %v906
    %v996 = vunpack.c.l.b16 %v907
    %v997 = vunpack.c.h.b16 %v907
    %v998 = vunpack.c.l.b16 %v908
    %v999 = vunpack.c.l.b16 %v909
    %v1000 = vunpack.c.h.b16 %v909
    %v1001 = vunpack.c.l.b16 %v910
    %v1002 = vunpack.c.l.b16 %v911
    %v1003 = vunpack.c.h.b16 %v911
    %v1004 = vunpack.c.l.b16 %v912
    %v1005 = vunpack.c.l.b16 %v913
    %v1006 = vunpack.c.h.b16 %v913
    %v1007 = vunpack.c.l.b16 %v914
    %v1008 = vunpack.c.l.b16 %v915
    %v1009 = vunpack.c.h.b16 %v915
    %v1010 = vunpack.c.l.b16 %v916
    %v1011 = vunpack.c.l.b16 %v917
    %v1012 = vunpack.c.h.b16 %v917
    %v1013 = vunpack.c.l.b16 %v918
    %v1014 = vunpack.c.l.b16 %v919
    %v1015 = vunpack.c.h.b16 %v919
    %v1016 = vunpack.c.l.b16 %v920
    %v1017 = vunpack.c.l.b16 %v921
    %v1018 = vunpack.c.h.b16 %v921
    %v1019 = vunpack.c.l.b16 %v922
    %v1020 = vpack.c.b16 %v975, %v972
    %v1021 = vpack.c.b16 %v976, %v973
    %v1022 = vpack.c.b16 %v977, %v974
    %v1023 = vpack.c.b16 %v981, %v978
    %v1024 = vpack.c.b16 %v982, %v979
    %v1025 = vpack.c.b16 %v983, %v980
    %v1026 = vpack.c.b16 %v987, %v984
    %v1027 = vpack.c.b16 %v988, %v985
    %v1028 = vpack.c.b16 %v989, %v986
    %v1029 = vpack.c.b16 %v993, %v990
    %v1030 = vpack.c.b16 %v994, %v991
    %v1031 = vpack.c.b16 %v995, %v992
    %v1032 = vpack.c.b16 %v999, %v996
    %v1033 = vpack.c.b16 %v1000, %v997
    %v1034 = vpack.c.b16 %v1001, %v998
    %v1035 = vpack.c.b16 %v1005, %v1002
    %v1036 = vpack.c.b16 %v1006, %v1003
    %v1037 = vpack.c.b16 %v1007, %v1004
    %v1038 = vpack.c.b16 %v1011, %v1008
    %v1039 = vpack.c.b16 %v1012, %v1009
    %v1040 = vpack.c.b16 %v1013, %v1010
    %v1041 = vpack.c.b16 %v1017, %v1014
    %v1042 = vpack.c.b16 %v1018, %v1015
    %v1043 = vpack.c.b16 %v1019, %v1016
    %1068 = vmatprep.subr.bf16.mxu0 %v1021
    %1069 = vmatpush1.bf16.msra.mxu0 %v1020
    %1070 = vmatprep.subr.bf16.mxu0 %v1024
    %1071 = vmatpush1.bf16.msra.mxu0 %v1023
    %1072 = vmatprep.subr.bf16.mxu0 %v1027
    %1073 = vmatpush1.bf16.msra.mxu0 %v1026
    %1074 = vmatprep.subr.bf16.mxu0 %v1030
    %1075 = vmatpush1.bf16.msra.mxu0 %v1029
    %1076 = vmatprep.subr.bf16.mxu0 %v1033
    %1077 = vmatpush1.bf16.msra.mxu0 %v1032
    %1078 = vmatprep.subr.bf16.mxu0 %v1036
    %1079 = vmatpush1.bf16.msra.mxu0 %v1035
    %1080 = vmatprep.subr.bf16.mxu0 %v1039
    %1081 = vmatpush1.bf16.msra.mxu0 %v1038
    %1082 = vmatprep.subr.bf16.mxu0 %v1042
    %1083 = vmatpush1.bf16.msra.mxu0 %v1041
    %1084 = vmatprep.subr.bf16.mxu0 0
    %1085 = vmatpush1.bf16.msra.mxu0 0
    %1086 = vmatprep.subr.bf16.mxu0 0
    %1087 = vmatpush1.bf16.msra.mxu0 0
    %1088 = vmatprep.subr.bf16.mxu0 0
    %1089 = vmatpush1.bf16.msra.mxu0 0
    %1090 = vmatprep.subr.bf16.mxu0 0
    %1091 = vmatpush1.bf16.msra.mxu0 0
    %1092 = vmatprep.subr.bf16.mxu0 0
    %1093 = vmatpush1.bf16.msra.mxu0 0
    %1094 = vmatprep.subr.bf16.mxu0 0
    %1095 = vmatpush1.bf16.msra.mxu0 0
    %1096 = vmatprep.subr.bf16.mxu0 0
    %1097 = vmatpush1.bf16.msra.mxu0 0
    %1098 = vmatprep.subr.bf16.mxu0 0
    %1099 = vmatpush1.bf16.msra.mxu0 0
    %1100 = vmatprep.mubr.bf16.mxu0 0
    %1101 = vmatmul.mubr.bf16.gmra.mrb[0].mxu0 %v890
    %v1102 = vpop.f32.mrb[0].mxu0
    %v1103 = vadd.f32 %v928, %v1102
    %v1104 = vpop.f32.mrb[0].mxu0
    %v1105 = vadd.f32 %v932, %v1104
    %v1106 = vpop.f32.mrb[0].mxu0
    %v1107 = vpop.f32.mrb[0].mxu0
    %1108 = vdwg.mxu0
    %1109 = vmatprep.subr.bf16.mxu0 0
    %1110 = vmatpush1.bf16.msra.mxu0 %v1022
    %1111 = vmatprep.subr.bf16.mxu0 0
    %1112 = vmatpush1.bf16.msra.mxu0 %v1025
    %1113 = vmatprep.subr.bf16.mxu0 0
    %1114 = vmatpush1.bf16.msra.mxu0 %v1028
    %1115 = vmatprep.subr.bf16.mxu0 0
    %1116 = vmatpush1.bf16.msra.mxu0 %v1031
    %1117 = vmatprep.subr.bf16.mxu0 0
    %1118 = vmatpush1.bf16.msra.mxu0 %v1034
    %1119 = vmatprep.subr.bf16.mxu0 0
    %1120 = vmatpush1.bf16.msra.mxu0 %v1037
    %1121 = vmatprep.subr.bf16.mxu0 0
    %1122 = vmatpush1.bf16.msra.mxu0 %v1040
    %1123 = vmatprep.subr.bf16.mxu0 0
    %1124 = vmatpush1.bf16.msra.mxu0 %v1043
    %1125 = vmatprep.subr.bf16.mxu0 0
    %1126 = vmatpush1.bf16.msra.mxu0 0
    %1127 = vmatprep.subr.bf16.mxu0 0
    %1128 = vmatpush1.bf16.msra.mxu0 0
    %1129 = vmatprep.subr.bf16.mxu0 0
    %1130 = vmatpush1.bf16.msra.mxu0 0
    %1131 = vmatprep.subr.bf16.mxu0 0
    %1132 = vmatpush1.bf16.msra.mxu0 0
    %1133 = vmatprep.subr.bf16.mxu0 0
    %1134 = vmatpush1.bf16.msra.mxu0 0
    %1135 = vmatprep.subr.bf16.mxu0 0
    %1136 = vmatpush1.bf16.msra.mxu0 0
    %1137 = vmatprep.subr.bf16.mxu0 0
    %1138 = vmatpush1.bf16.msra.mxu0 0
    %1139 = vmatprep.subr.bf16.mxu0 0
    %1140 = vmatpush1.bf16.msra.mxu0 0
    %1141 = vmatprep.mubr.bf16.mxu0 0
    %1142 = vmatmul.mubr.bf16.gmra.mrb[0].mxu0 %v890
    %v1143 = vpop.f32.mrb[0].mxu0
    %v1144 = vadd.f32 %v936, %v1143
    %v1145 = vpop.f32.mrb[0].mxu0
    %v1146 = vpop.f32.mrb[0].mxu0
    %v1147 = vpop.f32.mrb[0].mxu0
    %1148 = vdwg.mxu0
    %v1149 = vld [vmem:[%s2] sm:$0x3]
    %v1150 = vld [vmem:[#allocation5] sm:$0xff]
    %v1151 = vld [vmem:[#allocation5 + $0x8] sm:$0xff]
    %v1152 = vld [vmem:[#allocation5 + $0x10] sm:$0xff]
    %v1153 = vld [vmem:[#allocation5 + $0x18] sm:$0xff]
    %v1154 = vld [vmem:[#allocation5 + $0x20] sm:$0xff]
    %v1155 = vld [vmem:[#allocation5 + $0x28] sm:$0xff]
    %v1156 = vld [vmem:[#allocation5 + $0x30] sm:$0xff]
    %v1157 = vld [vmem:[#allocation5 + $0x38] sm:$0xff]
    %v1158 = vld [vmem:[#allocation5 + $0x40] sm:$0xff]
    %v1159 = vld [vmem:[#allocation5 + $0x48] sm:$0xff]
    %v1160 = vld [vmem:[#allocation5 + $0x50] sm:$0xff]
    %v1161 = vld [vmem:[#allocation5 + $0x58] sm:$0xff]
    %v1162 = vld [vmem:[#allocation5 + $0x60] sm:$0xff]
    %v1163 = vld [vmem:[#allocation5 + $0x68] sm:$0xff]
    %v1164 = vld [vmem:[#allocation5 + $0x70] sm:$0xff]
    %v1165 = vld [vmem:[#allocation5 + $0x78] sm:$0x3]
    %v1166 = vld [vmem:[#allocation5 + $0x80] sm:$0x3]
    %v1167 = vld [vmem:[#allocation5 + $0x88] sm:$0x3]
    %v1168 = vld [vmem:[%s3] sm:$0x3]
    %v1169 = vld [vmem:[#allocation7] sm:$0xff]
    %v1170 = vld [vmem:[#allocation7 + $0x8] sm:$0xff]
    %v1171 = vld [vmem:[#allocation7 + $0x10] sm:$0xff]
    %v1172 = vld [vmem:[#allocation7 + $0x18] sm:$0xff]
    %v1173 = vld [vmem:[#allocation7 + $0x20] sm:$0xff]
    %v1174 = vld [vmem:[#allocation7 + $0x28] sm:$0xff]
    %v1175 = vld [vmem:[#allocation7 + $0x30] sm:$0xff]
    %v1176 = vld [vmem:[#allocation7 + $0x38] sm:$0xff]
    %v1177 = vld [vmem:[#allocation7 + $0x40] sm:$0xff]
    %v1178 = vld [vmem:[#allocation7 + $0x48] sm:$0xff]
    %v1179 = vld [vmem:[#allocation7 + $0x50] sm:$0xff]
    %v1180 = vld [vmem:[#allocation7 + $0x58] sm:$0xff]
    %v1181 = vld [vmem:[#allocation7 + $0x60] sm:$0xff]
    %v1182 = vld [vmem:[#allocation7 + $0x68] sm:$0xff]
    %v1183 = vld [vmem:[#allocation7 + $0x70] sm:$0xff]
    %v1184 = vld [vmem:[#allocation7 + $0x78] sm:$0xff]
    %v1185 = vld [vmem:[#allocation7 + $0x80] sm:$0xff]
    %v1186 = vld [vmem:[#allocation7 + $0x88] sm:$0xff]
    %v1187 = vld [vmem:[#allocation7 + $0x90] sm:$0xff]
    %v1188 = vld [vmem:[#allocation7 + $0x98] sm:$0xff]
    %v1189 = vld [vmem:[#allocation7 + $0xa0] sm:$0xff]
    %v1190 = vld [vmem:[#allocation7 + $0xa8] sm:$0x3]
    %v1191 = vld [vmem:[#allocation7 + $0xb0] sm:$0x3]
    %v1192 = vld [vmem:[#allocation7 + $0xb8] sm:$0x3]
    %vm1193 = vcmask 474112
    %v1195 = vsel %vm1193, %v1168, 0
    %vm1197 = vcmask 1041408
    %v1199 = vsel %vm1197, %v1190, 0
    %v1202 = vsel %vm1197, %v1191, 0
    %v1205 = vsel %vm1197, %v1192, 0
    %1207 = vmatprep.subr.mxu0 %v1170
    %1208 = vmatpush1.msra.mxu0 %v1169
    %1209 = vmatprep.subr.mxu0 %v1173
    %1210 = vmatpush1.msra.mxu0 %v1172
    %1211 = vmatprep.subr.mxu0 %v1176
    %1212 = vmatpush1.msra.mxu0 %v1175
    %1213 = vmatprep.subr.mxu0 %v1179
    %1214 = vmatpush1.msra.mxu0 %v1178
    %1215 = vmatprep.subr.mxu0 %v1182
    %1216 = vmatpush1.msra.mxu0 %v1181
    %1217 = vmatprep.subr.mxu0 %v1185
    %1218 = vmatpush1.msra.mxu0 %v1184
    %1219 = vmatprep.subr.mxu0 %v1188
    %1220 = vmatpush1.msra.mxu0 %v1187
    %1221 = vmatprep.subr.mxu0 %v1202
    %1222 = vmatpush1.msra.mxu0 %v1199
    %1223 = vmatprep.subr.mxu0 0.0
    %1224 = vmatpush1.msra.mxu0 0.0
    %1225 = vmatprep.subr.mxu0 0.0
    %1226 = vmatpush1.msra.mxu0 0.0
    %1227 = vmatprep.subr.mxu0 0.0
    %1228 = vmatpush1.msra.mxu0 0.0
    %1229 = vmatprep.subr.mxu0 0.0
    %1230 = vmatpush1.msra.mxu0 0.0
    %1231 = vmatprep.subr.mxu0 0.0
    %1232 = vmatpush1.msra.mxu0 0.0
    %1233 = vmatprep.subr.mxu0 0.0
    %1234 = vmatpush1.msra.mxu0 0.0
    %1235 = vmatprep.subr.mxu0 0.0
    %1236 = vmatpush1.msra.mxu0 0.0
    %1237 = vmatprep.subr.mxu0 0.0
    %1238 = vmatpush1.msra.mxu0 0.0
    %1239 = vmatprep.subr.mxu0 0.0
    %1240 = vmatpush1.msra.mxu0 0.0
    %1241 = vmatprep.subr.mxu0 0.0
    %1242 = vmatpush1.msra.mxu0 0.0
    %1243 = vmatprep.subr.mxu0 0.0
    %1244 = vmatpush1.msra.mxu0 0.0
    %1245 = vmatprep.subr.mxu0 0.0
    %1246 = vmatpush1.msra.mxu0 0.0
    %1247 = vmatprep.subr.mxu0 0.0
    %1248 = vmatpush1.msra.mxu0 0.0
    %1249 = vmatprep.subr.mxu0 0.0
    %1250 = vmatpush1.msra.mxu0 0.0
    %1251 = vmatprep.subr.mxu0 0.0
    %1252 = vmatpush1.msra.mxu0 0.0
    %1253 = vmatprep.subr.mxu0 0.0
    %1254 = vmatpush1.msra.mxu0 0.0
    %1255 = vmatprep.subr.mxu0 0.0
    %1256 = vmatpush1.msra.mxu0 0.0
    %1257 = vmatprep.subr.mxu0 0.0
    %1258 = vmatpush1.msra.mxu0 0.0
    %1259 = vmatprep.subr.mxu0 0.0
    %1260 = vmatpush1.msra.mxu0 0.0
    %1261 = vmatprep.subr.mxu0 0.0
    %1262 = vmatpush1.msra.mxu0 0.0
    %1263 = vmatprep.subr.mxu0 0.0
    %1264 = vmatpush1.msra.mxu0 0.0
    %1265 = vmatprep.subr.mxu0 0.0
    %1266 = vmatpush1.msra.mxu0 0.0
    %1267 = vmatprep.subr.mxu0 0.0
    %1268 = vmatpush1.msra.mxu0 0.0
    %1269 = vmatprep.subr.mxu0 0.0
    %1270 = vmatpush1.msra.mxu0 0.0
    %1271 = vmatprep.mubr.f32.mxu0 0.0
    %1272 = vmatmul.mubr.f32.gmra.mrb[0].mxu0 %v1195
    %v1273 = vpop.f32.mrb[0].mxu0
    %v1274 = vadd.f32 0.0, %v1273
    %v1275 = vpop.f32.mrb[0].mxu0
    %v1276 = vadd.f32 0.0, %v1275
    %1277 = vdwg.mxu0
    %1278 = vmatprep.subr.mxu0 0.0
    %1279 = vmatpush1.msra.mxu0 %v1171
    %1280 = vmatprep.subr.mxu0 0.0
    %1281 = vmatpush1.msra.mxu0 %v1174
    %1282 = vmatprep.subr.mxu0 0.0
    %1283 = vmatpush1.msra.mxu0 %v1177
    %1284 = vmatprep.subr.mxu0 0.0
    %1285 = vmatpush1.msra.mxu0 %v1180
    %1286 = vmatprep.subr.mxu0 0.0
    %1287 = vmatpush1.msra.mxu0 %v1183
    %1288 = vmatprep.subr.mxu0 0.0
    %1289 = vmatpush1.msra.mxu0 %v1186
    %1290 = vmatprep.subr.mxu0 0.0
    %1291 = vmatpush1.msra.mxu0 %v1189
    %1292 = vmatprep.subr.mxu0 0.0
    %1293 = vmatpush1.msra.mxu0 %v1205
    %1294 = vmatprep.subr.mxu0 0.0
    %1295 = vmatpush1.msra.mxu0 0.0
    %1296 = vmatprep.subr.mxu0 0.0
    %1297 = vmatpush1.msra.mxu0 0.0
    %1298 = vmatprep.subr.mxu0 0.0
    %1299 = vmatpush1.msra.mxu0 0.0
    %1300 = vmatprep.subr.mxu0 0.0
    %1301 = vmatpush1.msra.mxu0 0.0
    %1302 = vmatprep.subr.mxu0 0.0
    %1303 = vmatpush1.msra.mxu0 0.0
    %1304 = vmatprep.subr.mxu0 0.0
    %1305 = vmatpush1.msra.mxu0 0.0
    %1306 = vmatprep.subr.mxu0 0.0
    %1307 = vmatpush1.msra.mxu0 0.0
    %1308 = vmatprep.subr.mxu0 0.0
    %1309 = vmatpush1.msra.mxu0 0.0
    %1310 = vmatprep.subr.mxu0 0.0
    %1311 = vmatpush1.msra.mxu0 0.0
    %1312 = vmatprep.subr.mxu0 0.0
    %1313 = vmatpush1.msra.mxu0 0.0
    %1314 = vmatprep.subr.mxu0 0.0
    %1315 = vmatpush1.msra.mxu0 0.0
    %1316 = vmatprep.subr.mxu0 0.0
    %1317 = vmatpush1.msra.mxu0 0.0
    %1318 = vmatprep.subr.mxu0 0.0
    %1319 = vmatpush1.msra.mxu0 0.0
    %1320 = vmatprep.subr.mxu0 0.0
    %1321 = vmatpush1.msra.mxu0 0.0
    %1322 = vmatprep.subr.mxu0 0.0
    %1323 = vmatpush1.msra.mxu0 0.0
    %1324 = vmatprep.subr.mxu0 0.0
    %1325 = vmatpush1.msra.mxu0 0.0
    %1326 = vmatprep.subr.mxu0 0.0
    %1327 = vmatpush1.msra.mxu0 0.0
    %1328 = vmatprep.subr.mxu0 0.0
    %1329 = vmatpush1.msra.mxu0 0.0
    %1330 = vmatprep.subr.mxu0 0.0
    %1331 = vmatpush1.msra.mxu0 0.0
    %1332 = vmatprep.subr.mxu0 0.0
    %1333 = vmatpush1.msra.mxu0 0.0
    %1334 = vmatprep.subr.mxu0 0.0
    %1335 = vmatpush1.msra.mxu0 0.0
    %1336 = vmatprep.subr.mxu0 0.0
    %1337 = vmatpush1.msra.mxu0 0.0
    %1338 = vmatprep.subr.mxu0 0.0
    %1339 = vmatpush1.msra.mxu0 0.0
    %1340 = vmatprep.subr.mxu0 0.0
    %1341 = vmatpush1.msra.mxu0 0.0
    %1342 = vmatprep.mubr.f32.mxu0 0.0
    %1343 = vmatmul.mubr.f32.gmra.mrb[0].mxu0 %v1195
    %v1344 = vpop.f32.mrb[0].mxu0
    %v1345 = vadd.f32 0.0, %v1344
    %v1346 = vpop.f32.mrb[0].mxu0
    %1347 = vdwg.mxu0
    %vm1348 = vcmask 343040
    %v1350 = vsel %vm1348, %v1149, 0
    %v1353 = vsel %vm1197, %v1165, 0
    %v1356 = vsel %vm1197, %v1166, 0
    %v1359 = vsel %vm1197, %v1167, 0
    %1361 = vmatprep.subr.mxu0 %v1151
    %1362 = vmatpush1.msra.mxu0 %v1150
    %1363 = vmatprep.subr.mxu0 %v1154
    %1364 = vmatpush1.msra.mxu0 %v1153
    %1365 = vmatprep.subr.mxu0 %v1157
    %1366 = vmatpush1.msra.mxu0 %v1156
    %1367 = vmatprep.subr.mxu0 %v1160
    %1368 = vmatpush1.msra.mxu0 %v1159
    %1369 = vmatprep.subr.mxu0 %v1163
    %1370 = vmatpush1.msra.mxu0 %v1162
    %1371 = vmatprep.subr.mxu0 %v1356
    %1372 = vmatpush1.msra.mxu0 %v1353
    %1373 = vmatprep.subr.mxu0 0.0
    %1374 = vmatpush1.msra.mxu0 0.0
    %1375 = vmatprep.subr.mxu0 0.0
    %1376 = vmatpush1.msra.mxu0 0.0
    %1377 = vmatprep.subr.mxu0 0.0
    %1378 = vmatpush1.msra.mxu0 0.0
    %1379 = vmatprep.subr.mxu0 0.0
    %1380 = vmatpush1.msra.mxu0 0.0
    %1381 = vmatprep.subr.mxu0 0.0
    %1382 = vmatpush1.msra.mxu0 0.0
    %1383 = vmatprep.subr.mxu0 0.0
    %1384 = vmatpush1.msra.mxu0 0.0
    %1385 = vmatprep.subr.mxu0 0.0
    %1386 = vmatpush1.msra.mxu0 0.0
    %1387 = vmatprep.subr.mxu0 0.0
    %1388 = vmatpush1.msra.mxu0 0.0
    %1389 = vmatprep.subr.mxu0 0.0
    %1390 = vmatpush1.msra.mxu0 0.0
    %1391 = vmatprep.subr.mxu0 0.0
    %1392 = vmatpush1.msra.mxu0 0.0
    %1393 = vmatprep.subr.mxu0 0.0
    %1394 = vmatpush1.msra.mxu0 0.0
    %1395 = vmatprep.subr.mxu0 0.0
    %1396 = vmatpush1.msra.mxu0 0.0
    %1397 = vmatprep.subr.mxu0 0.0
    %1398 = vmatpush1.msra.mxu0 0.0
    %1399 = vmatprep.subr.mxu0 0.0
    %1400 = vmatpush1.msra.mxu0 0.0
    %1401 = vmatprep.subr.mxu0 0.0
    %1402 = vmatpush1.msra.mxu0 0.0
    %1403 = vmatprep.subr.mxu0 0.0
    %1404 = vmatpush1.msra.mxu0 0.0
    %1405 = vmatprep.subr.mxu0 0.0
    %1406 = vmatpush1.msra.mxu0 0.0
    %1407 = vmatprep.subr.mxu0 0.0
    %1408 = vmatpush1.msra.mxu0 0.0
    %1409 = vmatprep.subr.mxu0 0.0
    %1410 = vmatpush1.msra.mxu0 0.0
    %1411 = vmatprep.subr.mxu0 0.0
    %1412 = vmatpush1.msra.mxu0 0.0
    %1413 = vmatprep.subr.mxu0 0.0
    %1414 = vmatpush1.msra.mxu0 0.0
    %1415 = vmatprep.subr.mxu0 0.0
    %1416 = vmatpush1.msra.mxu0 0.0
    %1417 = vmatprep.subr.mxu0 0.0
    %1418 = vmatpush1.msra.mxu0 0.0
    %1419 = vmatprep.subr.mxu0 0.0
    %1420 = vmatpush1.msra.mxu0 0.0
    %1421 = vmatprep.subr.mxu0 0.0
    %1422 = vmatpush1.msra.mxu0 0.0
    %1423 = vmatprep.subr.mxu0 0.0
    %1424 = vmatpush1.msra.mxu0 0.0
    %1425 = vmatprep.mubr.f32.mxu0 0.0
    %1426 = vmatmul.mubr.f32.gmra.mrb[0].mxu0 %v1350
    %v1427 = vpop.f32.mrb[0].mxu0
    %v1428 = vadd.f32 %v1274, %v1427
    %v1429 = vpop.f32.mrb[0].mxu0
    %v1430 = vadd.f32 %v1276, %v1429
    %1431 = vdwg.mxu0
    %1432 = vmatprep.subr.mxu0 0.0
    %1433 = vmatpush1.msra.mxu0 %v1152
    %1434 = vmatprep.subr.mxu0 0.0
    %1435 = vmatpush1.msra.mxu0 %v1155
    %1436 = vmatprep.subr.mxu0 0.0
    %1437 = vmatpush1.msra.mxu0 %v1158
    %1438 = vmatprep.subr.mxu0 0.0
    %1439 = vmatpush1.msra.mxu0 %v1161
    %1440 = vmatprep.subr.mxu0 0.0
    %1441 = vmatpush1.msra.mxu0 %v1164
    %1442 = vmatprep.subr.mxu0 0.0
    %1443 = vmatpush1.msra.mxu0 %v1359
    %1444 = vmatprep.subr.mxu0 0.0
    %1445 = vmatpush1.msra.mxu0 0.0
    %1446 = vmatprep.subr.mxu0 0.0
    %1447 = vmatpush1.msra.mxu0 0.0
    %1448 = vmatprep.subr.mxu0 0.0
    %1449 = vmatpush1.msra.mxu0 0.0
    %1450 = vmatprep.subr.mxu0 0.0
    %1451 = vmatpush1.msra.mxu0 0.0
    %1452 = vmatprep.subr.mxu0 0.0
    %1453 = vmatpush1.msra.mxu0 0.0
    %1454 = vmatprep.subr.mxu0 0.0
    %1455 = vmatpush1.msra.mxu0 0.0
    %1456 = vmatprep.subr.mxu0 0.0
    %1457 = vmatpush1.msra.mxu0 0.0
    %1458 = vmatprep.subr.mxu0 0.0
    %1459 = vmatpush1.msra.mxu0 0.0
    %1460 = vmatprep.subr.mxu0 0.0
    %1461 = vmatpush1.msra.mxu0 0.0
    %1462 = vmatprep.subr.mxu0 0.0
    %1463 = vmatpush1.msra.mxu0 0.0
    %1464 = vmatprep.subr.mxu0 0.0
    %1465 = vmatpush1.msra.mxu0 0.0
    %1466 = vmatprep.subr.mxu0 0.0
    %1467 = vmatpush1.msra.mxu0 0.0
    %1468 = vmatprep.subr.mxu0 0.0
    %1469 = vmatpush1.msra.mxu0 0.0
    %1470 = vmatprep.subr.mxu0 0.0
    %1471 = vmatpush1.msra.mxu0 0.0
    %1472 = vmatprep.subr.mxu0 0.0
    %1473 = vmatpush1.msra.mxu0 0.0
    %1474 = vmatprep.subr.mxu0 0.0
    %1475 = vmatpush1.msra.mxu0 0.0
    %1476 = vmatprep.subr.mxu0 0.0
    %1477 = vmatpush1.msra.mxu0 0.0
    %1478 = vmatprep.subr.mxu0 0.0
    %1479 = vmatpush1.msra.mxu0 0.0
    %1480 = vmatprep.subr.mxu0 0.0
    %1481 = vmatpush1.msra.mxu0 0.0
    %1482 = vmatprep.subr.mxu0 0.0
    %1483 = vmatpush1.msra.mxu0 0.0
    %1484 = vmatprep.subr.mxu0 0.0
    %1485 = vmatpush1.msra.mxu0 0.0
    %1486 = vmatprep.subr.mxu0 0.0
    %1487 = vmatpush1.msra.mxu0 0.0
    %1488 = vmatprep.subr.mxu0 0.0
    %1489 = vmatpush1.msra.mxu0 0.0
    %1490 = vmatprep.subr.mxu0 0.0
    %1491 = vmatpush1.msra.mxu0 0.0
    %1492 = vmatprep.subr.mxu0 0.0
    %1493 = vmatpush1.msra.mxu0 0.0
    %1494 = vmatprep.subr.mxu0 0.0
    %1495 = vmatpush1.msra.mxu0 0.0
    %1496 = vmatprep.mubr.f32.mxu0 0.0
    %1497 = vmatmul.mubr.f32.gmra.mrb[0].mxu0 %v1350
    %v1498 = vpop.f32.mrb[0].mxu0
    %v1499 = vadd.f32 %v1345, %v1498
    %v1500 = vpop.f32.mrb[0].mxu0
    %1501 = vdwg.mxu0
    %v1502 = vld [vmem:[%s4] sm:$0x3]
    %v1503 = vld [vmem:[#allocation8] sm:$0xff]
    %v1504 = vld [vmem:[#allocation8 + $0x8] sm:$0xff]
    %v1505 = vld [vmem:[#allocation8 + $0x10] sm:$0xff]
    %v1506 = vld [vmem:[#allocation8 + $0x18] sm:$0xff]
    %v1507 = vld [vmem:[#allocation8 + $0x20] sm:$0xff]
    %v1508 = vld [vmem:[#allocation8 + $0x28] sm:$0xff]
    %vm1509 = vcmask 130048
    %v1511 = vsel %vm1509, %v1502, 0
    %1513 = vmatprep.subr.mxu0 %v1504
    %1514 = vmatpush1.msra.mxu0 %v1503
    %1515 = vmatprep.subr.mxu0 %v1507
    %1516 = vmatpush1.msra.mxu0 %v1506
    %1517 = vmatprep.subr.mxu0 0.0
    %1518 = vmatpush1.msra.mxu0 0.0
    %1519 = vmatprep.subr.mxu0 0.0
    %1520 = vmatpush1.msra.mxu0 0.0
    %1521 = vmatprep.subr.mxu0 0.0
    %1522 = vmatpush1.msra.mxu0 0.0
    %1523 = vmatprep.subr.mxu0 0.0
    %1524 = vmatpush1.msra.mxu0 0.0
    %1525 = vmatprep.subr.mxu0 0.0
    %1526 = vmatpush1.msra.mxu0 0.0
    %1527 = vmatprep.subr.mxu0 0.0
    %1528 = vmatpush1.msra.mxu0 0.0
    %1529 = vmatprep.subr.mxu0 0.0
    %1530 = vmatpush1.msra.mxu0 0.0
    %1531 = vmatprep.subr.mxu0 0.0
    %1532 = vmatpush1.msra.mxu0 0.0
    %1533 = vmatprep.subr.mxu0 0.0
    %1534 = vmatpush1.msra.mxu0 0.0
    %1535 = vmatprep.subr.mxu0 0.0
    %1536 = vmatpush1.msra.mxu0 0.0
    %1537 = vmatprep.subr.mxu0 0.0
    %1538 = vmatpush1.msra.mxu0 0.0
    %1539 = vmatprep.subr.mxu0 0.0
    %1540 = vmatpush1.msra.mxu0 0.0
    %1541 = vmatprep.subr.mxu0 0.0
    %1542 = vmatpush1.msra.mxu0 0.0
    %1543 = vmatprep.subr.mxu0 0.0
    %1544 = vmatpush1.msra.mxu0 0.0
    %1545 = vmatprep.subr.mxu0 0.0
    %1546 = vmatpush1.msra.mxu0 0.0
    %1547 = vmatprep.subr.mxu0 0.0
    %1548 = vmatpush1.msra.mxu0 0.0
    %1549 = vmatprep.subr.mxu0 0.0
    %1550 = vmatpush1.msra.mxu0 0.0
    %1551 = vmatprep.subr.mxu0 0.0
    %1552 = vmatpush1.msra.mxu0 0.0
    %1553 = vmatprep.subr.mxu0 0.0
    %1554 = vmatpush1.msra.mxu0 0.0
    %1555 = vmatprep.subr.mxu0 0.0
    %1556 = vmatpush1.msra.mxu0 0.0
    %1557 = vmatprep.subr.mxu0 0.0
    %1558 = vmatpush1.msra.mxu0 0.0
    %1559 = vmatprep.subr.mxu0 0.0
    %1560 = vmatpush1.msra.mxu0 0.0
    %1561 = vmatprep.subr.mxu0 0.0
    %1562 = vmatpush1.msra.mxu0 0.0
    %1563 = vmatprep.subr.mxu0 0.0
    %1564 = vmatpush1.msra.mxu0 0.0
    %1565 = vmatprep.subr.mxu0 0.0
    %1566 = vmatpush1.msra.mxu0 0.0
    %1567 = vmatprep.subr.mxu0 0.0
    %1568 = vmatpush1.msra.mxu0 0.0
    %1569 = vmatprep.subr.mxu0 0.0
    %1570 = vmatpush1.msra.mxu0 0.0
    %1571 = vmatprep.subr.mxu0 0.0
    %1572 = vmatpush1.msra.mxu0 0.0
    %1573 = vmatprep.subr.mxu0 0.0
    %1574 = vmatpush1.msra.mxu0 0.0
    %1575 = vmatprep.subr.mxu0 0.0
    %1576 = vmatpush1.msra.mxu0 0.0
    %1577 = vmatprep.mubr.f32.mxu0 0.0
    %1578 = vmatmul.mubr.f32.gmra.mrb[0].mxu0 %v1511
    %v1579 = vpop.f32.mrb[0].mxu0
    %v1580 = vadd.f32 0.0, %v1579
    %v1581 = vpop.f32.mrb[0].mxu0
    %v1582 = vadd.f32 0.0, %v1581
    %1583 = vdwg.mxu0
    %1584 = vmatprep.subr.mxu0 0.0
    %1585 = vmatpush1.msra.mxu0 %v1505
    %1586 = vmatprep.subr.mxu0 0.0
    %1587 = vmatpush1.msra.mxu0 %v1508
    %1588 = vmatprep.subr.mxu0 0.0
    %1589 = vmatpush1.msra.mxu0 0.0
    %1590 = vmatprep.subr.mxu0 0.0
    %1591 = vmatpush1.msra.mxu0 0.0
    %1592 = vmatprep.subr.mxu0 0.0
    %1593 = vmatpush1.msra.mxu0 0.0
    %1594 = vmatprep.subr.mxu0 0.0
    %1595 = vmatpush1.msra.mxu0 0.0
    %1596 = vmatprep.subr.mxu0 0.0
    %1597 = vmatpush1.msra.mxu0 0.0
    %1598 = vmatprep.subr.mxu0 0.0
    %1599 = vmatpush1.msra.mxu0 0.0
    %1600 = vmatprep.subr.mxu0 0.0
    %1601 = vmatpush1.msra.mxu0 0.0
    %1602 = vmatprep.subr.mxu0 0.0
    %1603 = vmatpush1.msra.mxu0 0.0
    %1604 = vmatprep.subr.mxu0 0.0
    %1605 = vmatpush1.msra.mxu0 0.0
    %1606 = vmatprep.subr.mxu0 0.0
    %1607 = vmatpush1.msra.mxu0 0.0
    %1608 = vmatprep.subr.mxu0 0.0
    %1609 = vmatpush1.msra.mxu0 0.0
    %1610 = vmatprep.subr.mxu0 0.0
    %1611 = vmatpush1.msra.mxu0 0.0
    %1612 = vmatprep.subr.mxu0 0.0
    %1613 = vmatpush1.msra.mxu0 0.0
    %1614 = vmatprep.subr.mxu0 0.0
    %1615 = vmatpush1.msra.mxu0 0.0
    %1616 = vmatprep.subr.mxu0 0.0
    %1617 = vmatpush1.msra.mxu0 0.0
    %1618 = vmatprep.subr.mxu0 0.0
    %1619 = vmatpush1.msra.mxu0 0.0
    %1620 = vmatprep.subr.mxu0 0.0
    %1621 = vmatpush1.msra.mxu0 0.0
    %1622 = vmatprep.subr.mxu0 0.0
    %1623 = vmatpush1.msra.mxu0 0.0
    %1624 = vmatprep.subr.mxu0 0.0
    %1625 = vmatpush1.msra.mxu0 0.0
    %1626 = vmatprep.subr.mxu0 0.0
    %1627 = vmatpush1.msra.mxu0 0.0
    %1628 = vmatprep.subr.mxu0 0.0
    %1629 = vmatpush1.msra.mxu0 0.0
    %1630 = vmatprep.subr.mxu0 0.0
    %1631 = vmatpush1.msra.mxu0 0.0
    %1632 = vmatprep.subr.mxu0 0.0
    %1633 = vmatpush1.msra.mxu0 0.0
    %1634 = vmatprep.subr.mxu0 0.0
    %1635 = vmatpush1.msra.mxu0 0.0
    %1636 = vmatprep.subr.mxu0 0.0
    %1637 = vmatpush1.msra.mxu0 0.0
    %1638 = vmatprep.subr.mxu0 0.0
    %1639 = vmatpush1.msra.mxu0 0.0
    %1640 = vmatprep.subr.mxu0 0.0
    %1641 = vmatpush1.msra.mxu0 0.0
    %1642 = vmatprep.subr.mxu0 0.0
    %1643 = vmatpush1.msra.mxu0 0.0
    %1644 = vmatprep.subr.mxu0 0.0
    %1645 = vmatpush1.msra.mxu0 0.0
    %1646 = vmatprep.subr.mxu0 0.0
    %1647 = vmatpush1.msra.mxu0 0.0
    %1648 = vmatprep.mubr.f32.mxu0 0.0
    %1649 = vmatmul.mubr.f32.gmra.mrb[0].mxu0 %v1511
    %v1650 = vpop.f32.mrb[0].mxu0
    %v1651 = vadd.f32 0.0, %v1650
    %v1652 = vpop.f32.mrb[0].mxu0
    %1653 = vdwg.mxu0
    %v1654 = vadd.f32 %v1428, %v1580
    %v1655 = vadd.f32 %v1430, %v1582
    %v1656 = vadd.f32 %v1499, %v1651
    %v1657 = vsub.f32 %v1103, %v1654
    %v1658 = vsub.f32 %v1105, %v1655
    %v1659 = vsub.f32 %v1144, %v1656
    %v1660 = vmul.f32 %v1657, %v1657
    %v1661 = vmul.f32 %v1658, %v1658
    %v1662 = vmul.f32 %v1659, %v1659
    %v1663 = vld [vmem:[%s5] sm:$0x3]
    %1665 = vset.pattern.permute.xlu0 0
    %1666 = vperm.xlu0 %1665, %v1663
    %v1667 = vpop.permute.xlu0 %1666
    %v1669 = vmul.f32 %v1660, %v1667
    %v1670 = vmul.f32 %v1661, %v1667
    %v1671 = vmul.f32 %v1662, %v1667
    %v1672 = vsel %vm1197, %v1669, 0.0
    %v1673 = vrot.slane %v1672, 4
    %v1674 = vadd.f32 %v1672, %v1673
    %v1675 = vrot.slane %v1674, 2
    %v1676 = vadd.f32 %v1674, %v1675
    %v1677 = vrot.slane %v1676, 1
    %v1678 = vadd.f32 %v1676, %v1677
    %v1679 = vsel %vm1197, %v1670, 0.0
    %v1680 = vrot.slane %v1679, 4
    %v1681 = vadd.f32 %v1679, %v1680
    %v1682 = vrot.slane %v1681, 2
    %v1683 = vadd.f32 %v1681, %v1682
    %v1684 = vrot.slane %v1683, 1
    %v1685 = vadd.f32 %v1683, %v1684
    %v1686 = vsel %vm1197, %v1671, 0.0
    %v1687 = vrot.slane %v1686, 4
    %v1688 = vadd.f32 %v1686, %v1687
    %v1689 = vrot.slane %v1688, 2
    %v1690 = vadd.f32 %v1688, %v1689
    %v1691 = vrot.slane %v1690, 1
    %v1692 = vadd.f32 %v1690, %v1691
    %v1693 = vsel %vm1197, %v1660, 0.0
    %v1694 = vrot.slane %v1693, 4
    %v1695 = vadd.f32 %v1693, %v1694
    %v1696 = vrot.slane %v1695, 2
    %v1697 = vadd.f32 %v1695, %v1696
    %v1698 = vrot.slane %v1697, 1
    %v1699 = vadd.f32 %v1697, %v1698
    %v1700 = vsel %vm1197, %v1661, 0.0
    %v1701 = vrot.slane %v1700, 4
    %v1702 = vadd.f32 %v1700, %v1701
    %v1703 = vrot.slane %v1702, 2
    %v1704 = vadd.f32 %v1702, %v1703
    %v1705 = vrot.slane %v1704, 1
    %v1706 = vadd.f32 %v1704, %v1705
    %v1707 = vsel %vm1197, %v1662, 0.0
    %v1708 = vrot.slane %v1707, 4
    %v1709 = vadd.f32 %v1707, %v1708
    %v1710 = vrot.slane %v1709, 2
    %v1711 = vadd.f32 %v1709, %v1710
    %v1712 = vrot.slane %v1711, 1
    %v1713 = vadd.f32 %v1711, %v1712
    %v1714 = vlaneseq
    %v1715 = vand.u32 %v1714, 127
    %v1716 = vadd.s32 %v1715, 128
    %v1717 = vadd.s32 %v1715, 256
    %vm1718 = vcmp.ge.s32.totalorder %v1715, 105
    %vm1719 = vcmp.ge.s32.totalorder %v1716, 105
    %vm1720 = vcmp.ge.s32.totalorder %v1717, 105
    %vm1721 = vcmp.lt.s32.totalorder %v1715, 297
    %vm1722 = vcmp.lt.s32.totalorder %v1716, 297
    %vm1723 = vcmp.lt.s32.totalorder %v1717, 297
    %vm1724 = vmand %vm1718, %vm1721
    %vm1725 = vmand %vm1719, %vm1722
    %vm1726 = vmand %vm1720, %vm1723
    %v1727 = vsel %vm1724, %v1699, 0.0
    %v1728 = vsel %vm1725, %v1706, 0.0
    %v1729 = vsel %vm1726, %v1713, 0.0
    %vm1730 = vcmask 1040384
    %v1731 = vsel %vm1730, %v1727, 0.0
    %v1732 = vsel %vm1730, %v1728, 0.0
    %v1733 = vadd.f32 %v1731, %v1732
    %v1734 = vsel %vm1730, %v1729, 0.0
    %v1735 = vadd.f32 %v1733, %v1734
    %1736 = vadd.xlane.f32.xlu0 %v1735
    %v1737 = vpop.xlane.xlu0 %1736
    %v1738 = vrot.slane %v1737, 4
    %v1739 = vadd.f32 %v1737, %v1738
    %v1740 = vrot.slane %v1739, 2
    %v1741 = vadd.f32 %v1739, %v1740
    %v1742 = vrot.slane %v1741, 1
    %v1743 = vadd.f32 %v1741, %v1742
    %s1744 = vtos %v1743
    %s1745 = scalar_lea.smem [#allocation10], 0
    %1746 = sst [smem:[%s1745]] %s1744
    %vm1747 = vcmp.ge.s32.totalorder %v1715, 42
    %vm1748 = vcmp.ge.s32.totalorder %v1716, 42
    %vm1749 = vcmp.ge.s32.totalorder %v1717, 42
    %vm1750 = vcmp.lt.s32.totalorder %v1715, 105
    %vm1751 = vcmp.lt.s32.totalorder %v1716, 105
    %vm1752 = vcmp.lt.s32.totalorder %v1717, 105
    %vm1753 = vmand %vm1747, %vm1750
    %vm1754 = vmand %vm1748, %vm1751
    %vm1755 = vmand %vm1749, %vm1752
    %v1756 = vsel %vm1753, %v1699, 0.0
    %v1757 = vsel %vm1754, %v1706, 0.0
    %v1758 = vsel %vm1755, %v1713, 0.0
    %v1759 = vsel %vm1730, %v1756, 0.0
    %v1760 = vsel %vm1730, %v1757, 0.0
    %v1761 = vadd.f32 %v1759, %v1760
    %v1762 = vsel %vm1730, %v1758, 0.0
    %v1763 = vadd.f32 %v1761, %v1762
    %1764 = vadd.xlane.f32.xlu0 %v1763
    %v1765 = vpop.xlane.xlu0 %1764
    %v1766 = vrot.slane %v1765, 4
    %v1767 = vadd.f32 %v1765, %v1766
    %v1768 = vrot.slane %v1767, 2
    %v1769 = vadd.f32 %v1767, %v1768
    %v1770 = vrot.slane %v1769, 1
    %v1771 = vadd.f32 %v1769, %v1770
    %s1772 = vtos %v1771
    %s1773 = scalar_lea.smem [#allocation10], 1
    %1774 = sst [smem:[%s1773]] %s1772
    %vm1775 = vcmp.ge.s32.totalorder %v1715, 297
    %vm1776 = vcmp.ge.s32.totalorder %v1716, 297
    %vm1777 = vcmp.ge.s32.totalorder %v1717, 297
    %vm1778 = vcmp.lt.s32.totalorder %v1715, 345
    %vm1779 = vcmp.lt.s32.totalorder %v1716, 345
    %vm1780 = vcmp.lt.s32.totalorder %v1717, 345
    %vm1781 = vmand %vm1775, %vm1778
    %vm1782 = vmand %vm1776, %vm1779
    %vm1783 = vmand %vm1777, %vm1780
    %v1784 = vsel %vm1781, %v1699, 0.0
    %v1785 = vsel %vm1782, %v1706, 0.0
    %v1786 = vsel %vm1783, %v1713, 0.0
    %v1787 = vsel %vm1730, %v1784, 0.0
    %v1788 = vsel %vm1730, %v1785, 0.0
    %v1789 = vadd.f32 %v1787, %v1788
    %v1790 = vsel %vm1730, %v1786, 0.0
    %v1791 = vadd.f32 %v1789, %v1790
    %1792 = vadd.xlane.f32.xlu0 %v1791
    %v1793 = vpop.xlane.xlu0 %1792
    %v1794 = vrot.slane %v1793, 4
    %v1795 = vadd.f32 %v1793, %v1794
    %v1796 = vrot.slane %v1795, 2
    %v1797 = vadd.f32 %v1795, %v1796
    %v1798 = vrot.slane %v1797, 1
    %v1799 = vadd.f32 %v1797, %v1798
    %s1800 = vtos %v1799
    %s1801 = scalar_lea.smem [#allocation10], 2
    %1802 = sst [smem:[%s1801]] %s1800
    %vm1803 = vcmp.ge.s32.totalorder %v1715, 345
    %vm1804 = vcmp.ge.s32.totalorder %v1716, 345
    %vm1805 = vcmp.ge.s32.totalorder %v1717, 345
    %vm1806 = vcmp.lt.s32.totalorder %v1715, 355
    %vm1807 = vcmp.lt.s32.totalorder %v1716, 355
    %vm1808 = vcmp.lt.s32.totalorder %v1717, 355
    %vm1809 = vmand %vm1803, %vm1806
    %vm1810 = vmand %vm1804, %vm1807
    %vm1811 = vmand %vm1805, %vm1808
    %v1812 = vsel %vm1809, %v1699, 0.0
    %v1813 = vsel %vm1810, %v1706, 0.0
    %v1814 = vsel %vm1811, %v1713, 0.0
    %v1815 = vsel %vm1730, %v1812, 0.0
    %v1816 = vsel %vm1730, %v1813, 0.0
    %v1817 = vadd.f32 %v1815, %v1816
    %v1818 = vsel %vm1730, %v1814, 0.0
    %v1819 = vadd.f32 %v1817, %v1818
    %1820 = vadd.xlane.f32.xlu0 %v1819
    %v1821 = vpop.xlane.xlu0 %1820
    %v1822 = vrot.slane %v1821, 4
    %v1823 = vadd.f32 %v1821, %v1822
    %v1824 = vrot.slane %v1823, 2
    %v1825 = vadd.f32 %v1823, %v1824
    %v1826 = vrot.slane %v1825, 1
    %v1827 = vadd.f32 %v1825, %v1826
    %s1828 = vtos %v1827
    %s1829 = scalar_lea.smem [#allocation10], 3
    %1830 = sst [smem:[%s1829]] %s1828
    %vm1831 = vcmp.ge.s32.totalorder %v1715, 0
    %vm1832 = vcmp.ge.s32.totalorder %v1716, 0
    %vm1833 = vcmp.ge.s32.totalorder %v1717, 0
    %vm1834 = vcmp.lt.s32.totalorder %v1715, 42
    %vm1835 = vcmp.lt.s32.totalorder %v1716, 42
    %vm1836 = vcmp.lt.s32.totalorder %v1717, 42
    %vm1837 = vmand %vm1831, %vm1834
    %vm1838 = vmand %vm1832, %vm1835
    %vm1839 = vmand %vm1833, %vm1836
    %v1840 = vsel %vm1837, %v1699, 0.0
    %v1841 = vsel %vm1838, %v1706, 0.0
    %v1842 = vsel %vm1839, %v1713, 0.0
    %v1843 = vsel %vm1730, %v1840, 0.0
    %v1844 = vsel %vm1730, %v1841, 0.0
    %v1845 = vadd.f32 %v1843, %v1844
    %v1846 = vsel %vm1730, %v1842, 0.0
    %v1847 = vadd.f32 %v1845, %v1846
    %1848 = vadd.xlane.f32.xlu0 %v1847
    %v1849 = vpop.xlane.xlu0 %1848
    %v1850 = vrot.slane %v1849, 4
    %v1851 = vadd.f32 %v1849, %v1850
    %v1852 = vrot.slane %v1851, 2
    %v1853 = vadd.f32 %v1851, %v1852
    %v1854 = vrot.slane %v1853, 1
    %v1855 = vadd.f32 %v1853, %v1854
    %s1856 = vtos %v1855
    %s1857 = scalar_lea.smem [#allocation10], 4
    %1858 = sst [smem:[%s1857]] %s1856
    %vm1859 = vcmp.ge.s32.totalorder %v1715, 355
    %vm1860 = vcmp.ge.s32.totalorder %v1716, 355
    %vm1861 = vcmp.ge.s32.totalorder %v1717, 355
    %vm1862 = vcmp.lt.s32.totalorder %v1715, 371
    %vm1863 = vcmp.lt.s32.totalorder %v1716, 371
    %vm1864 = vcmp.lt.s32.totalorder %v1717, 371
    %vm1865 = vmand %vm1859, %vm1862
    %vm1866 = vmand %vm1860, %vm1863
    %vm1867 = vmand %vm1861, %vm1864
    %v1868 = vsel %vm1865, %v1678, 0.0
    %v1869 = vsel %vm1866, %v1685, 0.0
    %v1870 = vsel %vm1867, %v1692, 0.0
    %v1871 = vsel %vm1730, %v1868, 0.0
    %v1872 = vsel %vm1730, %v1869, 0.0
    %v1873 = vadd.f32 %v1871, %v1872
    %v1874 = vsel %vm1730, %v1870, 0.0
    %v1875 = vadd.f32 %v1873, %v1874
    %1876 = vadd.xlane.f32.xlu0 %v1875
    %v1877 = vpop.xlane.xlu0 %1876
    %v1878 = vrot.slane %v1877, 4
    %v1879 = vadd.f32 %v1877, %v1878
    %v1880 = vrot.slane %v1879, 2
    %v1881 = vadd.f32 %v1879, %v1880
    %v1882 = vrot.slane %v1881, 1
    %v1883 = vadd.f32 %v1881, %v1882
    %s1884 = vtos %v1883
    %s1885 = scalar_lea.smem [#allocation10], 5
    %1886 = sst [smem:[%s1885]] %s1884
    %v1887 = vld [vmem:[%s5] sm:$0x3]
    %vm1888 = vcmask 1024
    %v1889 = vsel %vm1888, %v1887, 0.0
    %1890 = vadd.xlane.f32.xlu0 %v1889
    %v1891 = vpop.xlane.xlu0 %1890
    %v1892 = vrot.slane %v1891, 4
    %v1893 = vadd.f32 %v1891, %v1892
    %v1894 = vrot.slane %v1893, 2
    %v1895 = vadd.f32 %v1893, %v1894
    %v1896 = vrot.slane %v1895, 1
    %v1897 = vadd.f32 %v1895, %v1896
    %s1898 = vtos %v1897
    %s1899 = scalar_lea.smem [#allocation10], 6
    %1900 = sst [smem:[%s1899]] %s1898
    %s1901 = scalar_lea.smem [#allocation10], 7
    %1902 = sst [smem:[%s1901]] 0.0
    // Predicated region
    $region74: #{ho_model_forward.1} parent=1 // pred_check
      _
    $region75: #{ho_model_forward.1} parent=1 // pred_check_branch
      %1904 = sbr.rel (0) target = $region77
    $region76: #{ho_model_forward.1} parent=1 // pred_region
      %s1906 = ssub.s32 16, 16
      %1907 = vsyncadd [#allocation4], %s1906
      %s1909 = sshll.u32 %s14, 4
      %s1910 = int_to_ptr.vmem [resolvable:$true] %s1909
      %1912 = dma.smem_to_vmem [#allocation10], 16, %s1910, [#allocation4]
    $region77: #{ho_model_forward.1} parent=1 // pred_fallthru
      _
    // Predicated region
    $region78: #{ho_model_forward.1} parent=1 // pred_check
      _
    $region79: #{ho_model_forward.1} parent=1 // pred_check_branch
      %1914 = sbr.rel (0) target = $region81
    $region80: #{ho_model_forward.1} parent=1 // pred_region
      %1915 = dma.done [#allocation4], 16
    $region81: #{ho_model_forward.1} parent=1 // pred_fallthru
      _
    %1916 = sfence
    %1917 = vsyncpa [#allocation3], 1
    %1918 = vsyncpa [#allocation6], 1
    %1919 = vsyncpa [#allocation9], 1
    %1920 = vsyncpa [#allocation4], 1

</llo_original>
